<compile_context>
chip_gen: v7x
topology: tpu7x:2x2x1
jax: 0.10.0
libtpu: 0.0.40
codegen_flags: <defaults>
</compile_context>

<pallas_src>
import jax
import jax.numpy as jnp
from jax.experimental import pallas as pl
from jax.experimental.pallas import tpu as pltpu

# ---- small, TPU-friendly shapes consistent with the module ----
NVOCAB = 256   # nvocab
M_EMB  = 128   # nemb          (M)
D_FEAT = 128   # nfeat[0]      (D)
L_FEAT = 16    # nfeat[1]      (L)
N_HID  = 128   # nhid          (N)
SEQ_T  = 8     # caption length processed per pallas_call

# packed-bias layout (all offsets are multiples of 128 -> cheap lane slices)
OFF_INIT  = 0                       # [b_init_h | b_init_c]   len 2N
OFF_ATT1  = OFF_INIT + 2 * N_HID    # b_att1                  len D
OFF_ATT2  = OFF_ATT1 + D_FEAT       # b_att2                  len D
OFF_GATES = OFF_ATT2 + D_FEAT       # b_ih + b_hh             len 4N
OFF_HEAD  = OFF_GATES + 4 * N_HID   # b_lh + b_lz             len M
OFF_LO    = OFF_HEAD + M_EMB        # b_lo                    len V
B_TOT     = OFF_LO + NVOCAB         # = 1408


def mrnn_kernel(ids_ref,                      # SMEM [T] int32 (scalar prefetch)
                featT_ref,                    # [L, D]        bf16
                emb_tbl_ref,                  # [V, M]        f32
                w_init_ref,                   # [D, 2N]       bf16 (init_h|init_c)
                w_att1_ref,                   # [D, D]        bf16
                w_att2_ref,                   # [N, D]        bf16
                w_vatt_ref,                   # [1, D]        bf16
                w_gates_ref,                  # [M+D+N, 4N]   bf16 (emb|ctx|h)
                w_head_ref,                   # [N+D, M]      bf16 (Lh|Lz)
                w_lo_ref,                     # [M, V]        bf16
                biases_ref,                   # [1, B_TOT]    f32 (packed)
                out_ref,                      # [T, V]        f32
                hN_ref, cN_ref,               # [1, N]        f32
                h_sc, c_sc,                   # [1, N] f32 scratch (carried state)
                att1_sc):                     # [L, D] f32 scratch (precomputed)
    t = pl.program_id(0)
    f32, bf16 = jnp.float32, jnp.bfloat16

    # ---- step 0: init_hidden + token-independent attention pre-projection ----
    @pl.when(t == 0)
    def _():
        avg = jnp.mean(featT_ref[...].astype(f32), axis=0, keepdims=True)    # [1,D]
        hc0 = (jnp.dot(avg.astype(bf16), w_init_ref[...],
                       preferred_element_type=f32)
               + biases_ref[:, OFF_INIT:OFF_INIT + 2 * N_HID])               # [1,2N]
        h_sc[...] = hc0[:, :N_HID]
        c_sc[...] = hc0[:, N_HID:]
        att1_sc[...] = (jnp.dot(featT_ref[...], w_att1_ref[...],
                                preferred_element_type=f32)
                        + biases_ref[:, OFF_ATT1:OFF_ATT1 + D_FEAT])         # [L,D]

    h_prev = h_sc[...]                                                        # [1,N]
    c_prev = c_sc[...]                                                        # [1,N]

    # ---- soft attention (recomputed each step from h_prev) ----
    input2 = (jnp.dot(h_prev.astype(bf16), w_att2_ref[...],
                      preferred_element_type=f32)
              + biases_ref[:, OFF_ATT2:OFF_ATT2 + D_FEAT])                    # [1,D]
    ai = jnp.tanh(att1_sc[...] + input2)                                      # [L,D]
    # scores[1,L] = Vatt_weight_row . ai^T ; Vatt bias dropped (cancels in softmax)
    scores = jnp.dot(w_vatt_ref[...].astype(f32), ai.T,
                     preferred_element_type=f32)                              # [1,L]
    # scores are tanh-bounded -> no max-subtraction needed before exp.
    e = jnp.exp(scores)
    alpha = e * pl.reciprocal(jnp.sum(e, axis=1, keepdims=True), approx=True)  # [1,L]
    context = jnp.dot(alpha.astype(bf16), featT_ref[...],
                      preferred_element_type=f32)                             # [1,D]
    # TODO(synk): 'hard' attention uses np.random.choice on host; only the
    # 'soft' branch is implemented.

    # ---- embedding lookup (table resident in VMEM, token id from SMEM) ----
    tok = ids_ref[t]
    emb = emb_tbl_ref[pl.ds(tok, 1), :]                                       # [1,M] f32
    # TODO(synk): for a production-size vocab use a pl.Element row-gather
    # BlockSpec / manual DMA instead of a VMEM-resident table.

    # ---- LSTMCell: one fused gate matmul; PyTorch gate order i,f,g,o ----
    x_cat = jnp.concatenate([emb, context, h_prev], axis=1).astype(bf16)      # [1,M+D+N]
    gates = (jnp.dot(x_cat, w_gates_ref[...], preferred_element_type=f32)
             + biases_ref[:, OFF_GATES:OFF_GATES + 4 * N_HID])                # [1,4N]
    i_g = jax.nn.sigmoid(gates[:, 0:N_HID])
    f_g = jax.nn.sigmoid(gates[:, N_HID:2 * N_HID])
    g_g = jnp.tanh(gates[:, 2 * N_HID:3 * N_HID])
    o_g = jax.nn.sigmoid(gates[:, 3 * N_HID:4 * N_HID])
    c_t = f_g * c_prev + i_g * g_g
    h_t = o_g * jnp.tanh(c_t)
    h_sc[...] = h_t
    c_sc[...] = c_t

    # ---- output head: Lo(emb + Lh(h_t) + Lz(context)), Lh|Lz fused ----
    hz = jnp.concatenate([h_t, context], axis=1).astype(bf16)                 # [1,N+D]
    proj = (emb
            + jnp.dot(hz, w_head_ref[...], preferred_element_type=f32)
            + biases_ref[:, OFF_HEAD:OFF_HEAD + M_EMB])                       # [1,M]
    logits = (jnp.dot(proj.astype(bf16), w_lo_ref[...],
                      preferred_element_type=f32)
              + biases_ref[:, OFF_LO:OFF_LO + NVOCAB])                        # [1,V]

    out_ref[pl.ds(t, 1), :] = logits
    hN_ref[...] = h_t
    cN_ref[...] = c_t


def mrnn_forward(featT_bf, caption_ids, kp):
    T = caption_ids.shape[0]

    def resident(shape):
        # full-array block, same block index every step -> DMA'd once, stays in VMEM
        return pl.BlockSpec(shape, lambda t, ids: (0, 0))

    in_specs = [
        resident((L_FEAT, D_FEAT)),                       # featT (bf16)
        resident((NVOCAB, M_EMB)),                        # emb table (f32)
        resident((D_FEAT, 2 * N_HID)),                    # w_init
        resident((D_FEAT, D_FEAT)),                       # w_att1
        resident((N_HID, D_FEAT)),                        # w_att2
        resident((1, D_FEAT)),                            # w_vatt
        resident((M_EMB + D_FEAT + N_HID, 4 * N_HID)),    # w_gates
        resident((N_HID + D_FEAT, M_EMB)),                # w_head
        resident((M_EMB, NVOCAB)),                        # w_lo
        resident((1, B_TOT)),                             # packed biases
    ]
    out_specs = (
        resident((T, NVOCAB)),                            # logits stay resident, one writeback
        resident((1, N_HID)),
        resident((1, N_HID)),
    )
    grid_spec = pltpu.PrefetchScalarGridSpec(
        num_scalar_prefetch=1,
        grid=(T,),
        in_specs=in_specs,
        out_specs=out_specs,
        scratch_shapes=[pltpu.VMEM((1, N_HID), jnp.float32),     # h carry
                        pltpu.VMEM((1, N_HID), jnp.float32),     # c carry
                        pltpu.VMEM((L_FEAT, D_FEAT), jnp.float32)],  # Watt1(featT)+b
    )
    return pl.pallas_call(
        mrnn_kernel,
        out_shape=(jax.ShapeDtypeStruct((T, NVOCAB), jnp.float32),
                   jax.ShapeDtypeStruct((1, N_HID), jnp.float32),
                   jax.ShapeDtypeStruct((1, N_HID), jnp.float32)),
        grid_spec=grid_spec,
        compiler_params=pltpu.CompilerParams(
            # token axis is a recurrence; no independent batch axis exists to
            # mark "parallel" (effective batch 1).
            dimension_semantics=("arbitrary",)),
    )(caption_ids, featT_bf, kp["emb_table"], kp["w_init"], kp["w_att1"],
      kp["w_att2"], kp["w_vatt"], kp["w_gates"], kp["w_head"], kp["w_lo"],
      kp["biases"])


def init_params(key):
    """Module-style (unfused, f32) parameters; Linear weights pre-transposed [in, out]."""
    ks = iter(jax.random.split(key, 24))

    def w(fan_in, shape):
        return (jax.random.normal(next(ks), shape, jnp.float32)
                / jnp.sqrt(jnp.float32(fan_in)))

    def b(shape):
        return 0.1 * jax.random.normal(next(ks), shape, jnp.float32)

    p = {}
    p["emb_table"] = w(M_EMB, (NVOCAB, M_EMB))
    p["w_init_h"] = w(D_FEAT, (D_FEAT, N_HID)); p["b_init_h"] = b((1, N_HID))
    p["w_init_c"] = w(D_FEAT, (D_FEAT, N_HID)); p["b_init_c"] = b((1, N_HID))
    p["w_att1"]   = w(D_FEAT, (D_FEAT, D_FEAT)); p["b_att1"] = b((1, D_FEAT))
    p["w_att2"]   = w(N_HID,  (N_HID, D_FEAT));  p["b_att2"] = b((1, D_FEAT))
    p["w_vatt"]   = w(D_FEAT, (1, D_FEAT));      p["b_vatt"] = b((1, 1))
    p["w_ih"]     = w(M_EMB + D_FEAT, (M_EMB + D_FEAT, 4 * N_HID))
    p["b_ih"]     = b((1, 4 * N_HID))
    p["w_hh"]     = w(N_HID, (N_HID, 4 * N_HID)); p["b_hh"] = b((1, 4 * N_HID))
    p["w_lh"]     = w(N_HID, (N_HID, M_EMB));     p["b_lh"] = b((1, M_EMB))
    p["w_lz"]     = w(D_FEAT, (D_FEAT, M_EMB));   p["b_lz"] = b((1, M_EMB))
    p["w_lo"]     = w(M_EMB, (M_EMB, NVOCAB));    p["b_lo"] = b((1, NVOCAB))
    return p


def pack_params(p):
    """Fuse weights, fold biases into one packed vector, cast weights to bf16."""
    bf = lambda x: x.astype(jnp.bfloat16)
    kp = {}
    kp["emb_table"] = p["emb_table"]                              # f32 (dyn row slice)
    kp["w_init"]  = bf(jnp.concatenate([p["w_init_h"], p["w_init_c"]], axis=1))
    kp["w_att1"]  = bf(p["w_att1"])
    kp["w_att2"]  = bf(p["w_att2"])
    kp["w_vatt"]  = bf(p["w_vatt"])
    kp["w_gates"] = bf(jnp.concatenate([p["w_ih"], p["w_hh"]], axis=0))
    kp["w_head"]  = bf(jnp.concatenate([p["w_lh"], p["w_lz"]], axis=0))
    kp["w_lo"]    = bf(p["w_lo"])
    biases = jnp.zeros((1, B_TOT), jnp.float32)
    biases = biases.at[:, OFF_INIT:OFF_INIT + 2 * N_HID].set(
        jnp.concatenate([p["b_init_h"], p["b_init_c"]], axis=1))
    biases = biases.at[:, OFF_ATT1:OFF_ATT1 + D_FEAT].set(p["b_att1"])
    biases = biases.at[:, OFF_ATT2:OFF_ATT2 + D_FEAT].set(p["b_att2"])
    biases = biases.at[:, OFF_GATES:OFF_GATES + 4 * N_HID].set(p["b_ih"] + p["b_hh"])
    biases = biases.at[:, OFF_HEAD:OFF_HEAD + M_EMB].set(p["b_lh"] + p["b_lz"])
    biases = biases.at[:, OFF_LO:OFF_LO + NVOCAB].set(p["b_lo"])
    kp["biases"] = biases
    return kp


def mrnn_reference(featT_bf, caption_ids, p):
    """Pure-JAX reference of the module math, mirroring the kernel's precision
    choices (bf16 MXU operands, f32 accumulation / nonlinearities / state)."""
    f32, bf = jnp.float32, jnp.bfloat16

    def dot(a, b):
        return jnp.dot(a.astype(bf), b.astype(bf), preferred_element_type=f32)

    avg = jnp.mean(featT_bf.astype(f32), axis=0, keepdims=True)
    h = dot(avg, p["w_init_h"]) + p["b_init_h"]
    c = dot(avg, p["w_init_c"]) + p["b_init_c"]
    att1 = dot(featT_bf, p["w_att1"]) + p["b_att1"]

    logits_all = []
    for t in range(caption_ids.shape[0]):
        emb = p["emb_table"][caption_ids[t]][None, :]
        ai = jnp.tanh(att1 + dot(h, p["w_att2"]) + p["b_att2"])
        w_vatt = p["w_vatt"].astype(bf).astype(f32)
        scores = jnp.dot(w_vatt, ai.T, preferred_element_type=f32) + p["b_vatt"]
        alpha = jax.nn.softmax(scores, axis=1)
        context = dot(alpha, featT_bf)
        x = jnp.concatenate([emb, context], axis=1)
        gates = dot(x, p["w_ih"]) + p["b_ih"] + dot(h, p["w_hh"]) + p["b_hh"]
        N = N_HID
        i = jax.nn.sigmoid(gates[:, :N])
        f = jax.nn.sigmoid(gates[:, N:2 * N])
        g = jnp.tanh(gates[:, 2 * N:3 * N])
        o = jax.nn.sigmoid(gates[:, 3 * N:])
        c = f * c + i * g
        h = o * jnp.tanh(c)
        proj = (emb + dot(h, p["w_lh"]) + p["b_lh"]
                + dot(context, p["w_lz"]) + p["b_lz"])
        logits_all.append(dot(proj, p["w_lo"]) + p["b_lo"])
    return jnp.concatenate(logits_all, axis=0), h, c


if __name__ == "__main__":
    key = jax.random.PRNGKey(0)
    k_feat, k_param, k_cap = jax.random.split(key, 3)
    featT = jax.random.normal(k_feat, (L_FEAT, D_FEAT), jnp.float32)   # features^T
    featT_bf = featT.astype(jnp.bfloat16)
    caption = jax.random.randint(k_cap, (SEQ_T,), 0, NVOCAB, dtype=jnp.int32)
    params = init_params(k_param)
    kparams = pack_params(params)

    logits, h_t, c_t = mrnn_forward(featT_bf, caption, kparams)
    jax.block_until_ready((logits, h_t, c_t))

    ref_logits, ref_h, ref_c = mrnn_reference(featT_bf, caption, params)
    # Tolerances account for pl.reciprocal(approx=True) in the attention
    # softmax and fused-matmul accumulation-order differences compounded over
    # SEQ_T recurrent steps; any structural bug produces O(1) errors.
    assert logits.shape == (SEQ_T, NVOCAB)
    assert jnp.allclose(logits, ref_logits, atol=5e-2, rtol=5e-2), \
        float(jnp.max(jnp.abs(logits - ref_logits)))
    assert jnp.allclose(h_t, ref_h, atol=2e-2, rtol=2e-2), \
        float(jnp.max(jnp.abs(h_t - ref_h)))
    assert jnp.allclose(c_t, ref_c, atol=2e-2, rtol=2e-2), \
        float(jnp.max(jnp.abs(c_t - ref_c)))
    print("KERNEL_OK")
</pallas_src>

<mosaic_0001>
module attributes {stable_mosaic.version = 11 : i64} {
  func.func @mrnn_kernel(%arg0: i32, %arg1: memref<8xi32, #tpu.memory_space<smem>>, %arg2: memref<16x128xbf16, #tpu.memory_space<vmem>>, %arg3: memref<256x128xf32, #tpu.memory_space<vmem>>, %arg4: memref<128x256xbf16, #tpu.memory_space<vmem>>, %arg5: memref<128x128xbf16, #tpu.memory_space<vmem>>, %arg6: memref<128x128xbf16, #tpu.memory_space<vmem>>, %arg7: memref<1x128xbf16, #tpu.memory_space<vmem>>, %arg8: memref<384x512xbf16, #tpu.memory_space<vmem>>, %arg9: memref<256x128xbf16, #tpu.memory_space<vmem>>, %arg10: memref<128x256xbf16, #tpu.memory_space<vmem>>, %arg11: memref<1x1408xf32, #tpu.memory_space<vmem>>, %arg12: memref<8x256xf32, #tpu.memory_space<vmem>>, %arg13: memref<1x128xf32, #tpu.memory_space<vmem>>, %arg14: memref<1x128xf32, #tpu.memory_space<vmem>>, %arg15: memref<1x128xf32, #tpu.memory_space<vmem>>, %arg16: memref<1x128xf32, #tpu.memory_space<vmem>>, %arg17: memref<16x128xf32, #tpu.memory_space<vmem>>) attributes {dimension_semantics = [#tpu.dimension_semantics<arbitrary>], iteration_bounds = array<i64: 8>, scalar_prefetch = 1 : i64, scratch_operands = 3 : i64, tpu.core_type = #tpu.core_type<tc>, window_params = [{pipeline_mode = #tpu.pipeline_mode<synchronous>, transform_indices = @transform_0, window_bounds = array<i64: 16, 128>}, {pipeline_mode = #tpu.pipeline_mode<synchronous>, transform_indices = @transform_1, window_bounds = array<i64: 256, 128>}, {pipeline_mode = #tpu.pipeline_mode<synchronous>, transform_indices = @transform_2, window_bounds = array<i64: 128, 256>}, {pipeline_mode = #tpu.pipeline_mode<synchronous>, transform_indices = @transform_3, window_bounds = array<i64: 128, 128>}, {pipeline_mode = #tpu.pipeline_mode<synchronous>, transform_indices = @transform_4, window_bounds = array<i64: 128, 128>}, {pipeline_mode = #tpu.pipeline_mode<synchronous>, transform_indices = @transform_5, window_bounds = array<i64: 1, 128>}, {pipeline_mode = #tpu.pipeline_mode<synchronous>, transform_indices = @transform_6, window_bounds = array<i64: 384, 512>}, {pipeline_mode = #tpu.pipeline_mode<synchronous>, transform_indices = @transform_7, window_bounds = array<i64: 256, 128>}, {pipeline_mode = #tpu.pipeline_mode<synchronous>, transform_indices = @transform_8, window_bounds = array<i64: 128, 256>}, {pipeline_mode = #tpu.pipeline_mode<synchronous>, transform_indices = @transform_9, window_bounds = array<i64: 1, 1408>}, {pipeline_mode = #tpu.pipeline_mode<synchronous>, transform_indices = @transform_10, window_bounds = array<i64: 8, 256>}, {pipeline_mode = #tpu.pipeline_mode<synchronous>, transform_indices = @transform_11, window_bounds = array<i64: 1, 128>}, {pipeline_mode = #tpu.pipeline_mode<synchronous>, transform_indices = @transform_12, window_bounds = array<i64: 1, 128>}]} {
    %c0_i32 = arith.constant 0 : i32
    %0 = arith.cmpi eq, %arg0, %c0_i32 : i32
    %1 = arith.extui %0 : i1 to i32
    %c0_i32_0 = arith.constant 0 : i32
    %2 = arith.cmpi ne, %1, %c0_i32_0 : i32
    scf.if %2 {
      %c0_41 = arith.constant 0 : index
      %c0_42 = arith.constant 0 : index
      %80 = vector.load %arg2[%c0_41, %c0_42] : memref<16x128xbf16, #tpu.memory_space<vmem>>, vector<16x128xbf16>
      %81 = arith.extf %80 : vector<16x128xbf16> to vector<16x128xf32>
      %cst_43 = arith.constant dense<0.000000e+00> : vector<128xf32>
      %82 = vector.multi_reduction <add>, %81, %cst_43 [0] : vector<16x128xf32> to vector<128xf32>
      %83 = vector.shape_cast %82 : vector<128xf32> to vector<1x128xf32>
      %cst_44 = arith.constant 1.600000e+01 : f32
      %84 = vector.broadcast %cst_44 : f32 to vector<1x128xf32>
      %85 = arith.divf %83, %84 : vector<1x128xf32>
      %86 = arith.truncf %85 : vector<1x128xf32> to vector<1x128xbf16>
      %c0_45 = arith.constant 0 : index
      %c0_46 = arith.constant 0 : index
      %87 = vector.load %arg4[%c0_45, %c0_46] : memref<128x256xbf16, #tpu.memory_space<vmem>>, vector<128x256xbf16>
      %cst_47 = arith.constant dense<0.000000e+00> : vector<1x256xf32>
      %88 = tpu.matmul %86, %87, %cst_47 {dimension_numbers = #tpu.dot_dimension_numbers<[1], [0], [0], [1], [0, 0, 1, 1], [], []>} : vector<1x128xbf16>, vector<128x256xbf16>, vector<1x256xf32> -> vector<1x256xf32>
      %c0_48 = arith.constant 0 : index
      %c0_49 = arith.constant 0 : index
      %89 = vector.load %arg11[%c0_48, %c0_49] : memref<1x1408xf32, #tpu.memory_space<vmem>>, vector<1x256xf32>
      %90 = arith.addf %88, %89 : vector<1x256xf32>
      %91 = vector.extract_strided_slice %90 {offsets = [0, 0], sizes = [1, 128], strides = [1, 1]} : vector<1x256xf32> to vector<1x128xf32>
      %c0_50 = arith.constant 0 : index
      %c0_51 = arith.constant 0 : index
      %92 = vector.load %arg15[%c0_50, %c0_51] : memref<1x128xf32, #tpu.memory_space<vmem>>, vector<1x128xf32>
      tpu.vector_store %arg15[%c0_50, %c0_51], %91 {strides = array<i32>} : memref<1x128xf32, #tpu.memory_space<vmem>>, vector<1x128xf32>,
      %93 = vector.extract_strided_slice %90 {offsets = [0, 128], sizes = [1, 128], strides = [1, 1]} : vector<1x256xf32> to vector<1x128xf32>
      %c0_52 = arith.constant 0 : index
      %c0_53 = arith.constant 0 : index
      %94 = vector.load %arg16[%c0_52, %c0_53] : memref<1x128xf32, #tpu.memory_space<vmem>>, vector<1x128xf32>
      tpu.vector_store %arg16[%c0_52, %c0_53], %93 {strides = array<i32>} : memref<1x128xf32, #tpu.memory_space<vmem>>, vector<1x128xf32>,
      %c0_54 = arith.constant 0 : index
      %c0_55 = arith.constant 0 : index
      %95 = vector.load %arg2[%c0_54, %c0_55] : memref<16x128xbf16, #tpu.memory_space<vmem>>, vector<16x128xbf16>
      %c0_56 = arith.constant 0 : index
      %c0_57 = arith.constant 0 : index
      %96 = vector.load %arg5[%c0_56, %c0_57] : memref<128x128xbf16, #tpu.memory_space<vmem>>, vector<128x128xbf16>
      %cst_58 = arith.constant dense<0.000000e+00> : vector<16x128xf32>
      %97 = tpu.matmul %95, %96, %cst_58 {dimension_numbers = #tpu.dot_dimension_numbers<[1], [0], [0], [1], [0, 0, 1, 1], [], []>} : vector<16x128xbf16>, vector<128x128xbf16>, vector<16x128xf32> -> vector<16x128xf32>
      %c0_59 = arith.constant 0 : index
      %c256 = arith.constant 256 : index
      %98 = vector.load %arg11[%c0_59, %c256] : memref<1x1408xf32, #tpu.memory_space<vmem>>, vector<1x128xf32>
      %99 = vector.broadcast %98 : vector<1x128xf32> to vector<16x128xf32>
      %100 = arith.addf %97, %99 : vector<16x128xf32>
      %c0_60 = arith.constant 0 : index
      %c0_61 = arith.constant 0 : index
      %101 = vector.load %arg17[%c0_60, %c0_61] : memref<16x128xf32, #tpu.memory_space<vmem>>, vector<16x128xf32>
      tpu.vector_store %arg17[%c0_60, %c0_61], %100 {strides = array<i32>} : memref<16x128xf32, #tpu.memory_space<vmem>>, vector<16x128xf32>,
    } else {
    }
    %c0 = arith.constant 0 : index
    %c0_1 = arith.constant 0 : index
    %3 = vector.load %arg15[%c0, %c0_1] : memref<1x128xf32, #tpu.memory_space<vmem>>, vector<1x128xf32>
    %c0_2 = arith.constant 0 : index
    %c0_3 = arith.constant 0 : index
    %4 = vector.load %arg16[%c0_2, %c0_3] : memref<1x128xf32, #tpu.memory_space<vmem>>, vector<1x128xf32>
    %5 = arith.truncf %3 : vector<1x128xf32> to vector<1x128xbf16>
    %c0_4 = arith.constant 0 : index
    %c0_5 = arith.constant 0 : index
    %6 = vector.load %arg6[%c0_4, %c0_5] : memref<128x128xbf16, #tpu.memory_space<vmem>>, vector<128x128xbf16>
    %cst = arith.constant dense<0.000000e+00> : vector<1x128xf32>
    %7 = tpu.matmul %5, %6, %cst {dimension_numbers = #tpu.dot_dimension_numbers<[1], [0], [0], [1], [0, 0, 1, 1], [], []>} : vector<1x128xbf16>, vector<128x128xbf16>, vector<1x128xf32> -> vector<1x128xf32>
    %c0_6 = arith.constant 0 : index
    %c384 = arith.constant 384 : index
    %8 = vector.load %arg11[%c0_6, %c384] : memref<1x1408xf32, #tpu.memory_space<vmem>>, vector<1x128xf32>
    %9 = arith.addf %7, %8 : vector<1x128xf32>
    %c0_7 = arith.constant 0 : index
    %c0_8 = arith.constant 0 : index
    %10 = vector.load %arg17[%c0_7, %c0_8] : memref<16x128xf32, #tpu.memory_space<vmem>>, vector<16x128xf32>
    %11 = vector.broadcast %9 : vector<1x128xf32> to vector<16x128xf32>
    %12 = arith.addf %10, %11 : vector<16x128xf32>
    %13 = math.tanh %12 : vector<16x128xf32>
    %c0_9 = arith.constant 0 : index
    %c0_10 = arith.constant 0 : index
    %14 = vector.load %arg7[%c0_9, %c0_10] : memref<1x128xbf16, #tpu.memory_space<vmem>>, vector<1x128xbf16>
    %15 = arith.extf %14 : vector<1x128xbf16> to vector<1x128xf32>
    %16 = tpu.transpose %13, [1, 0] : vector<16x128xf32> -> vector<128x16xf32>
    %cst_11 = arith.constant dense<0.000000e+00> : vector<1x16xf32>
    %17 = tpu.matmul %15, %16, %cst_11 {dimension_numbers = #tpu.dot_dimension_numbers<[1], [0], [0], [1], [0, 0, 1, 1], [], []>} : vector<1x128xf32>, vector<128x16xf32>, vector<1x16xf32> -> vector<1x16xf32>
    %18 = math.exp %17 : vector<1x16xf32>
    %cst_12 = arith.constant dense<0.000000e+00> : vector<1xf32>
    %19 = vector.multi_reduction <add>, %18, %cst_12 [1] : vector<1x16xf32> to vector<1xf32>
    %20 = vector.shape_cast %19 : vector<1xf32> to vector<1x1xf32>
    %21 = tpu.reciprocal %20 {approx = true} : vector<1x1xf32> -> vector<1x1xf32>
    %22 = vector.broadcast %21 : vector<1x1xf32> to vector<1x16xf32>
    %23 = arith.mulf %18, %22 : vector<1x16xf32>
    %24 = arith.truncf %23 : vector<1x16xf32> to vector<1x16xbf16>
    %c0_13 = arith.constant 0 : index
    %c0_14 = arith.constant 0 : index
    %25 = vector.load %arg2[%c0_13, %c0_14] : memref<16x128xbf16, #tpu.memory_space<vmem>>, vector<16x128xbf16>
    %cst_15 = arith.constant dense<0.000000e+00> : vector<1x128xf32>
    %26 = tpu.matmul %24, %25, %cst_15 {dimension_numbers = #tpu.dot_dimension_numbers<[1], [0], [0], [1], [0, 0, 1, 1], [], []>} : vector<1x16xbf16>, vector<16x128xbf16>, vector<1x128xf32> -> vector<1x128xf32>
    %27 = arith.index_cast %arg0 : i32 to index
    %28 = memref.load %arg1[%27] : memref<8xi32, #tpu.memory_space<smem>>
    %29 = arith.index_cast %28 : i32 to index
    %c0_16 = arith.constant 0 : index
    %30 = vector.load %arg3[%29, %c0_16] : memref<256x128xf32, #tpu.memory_space<vmem>>, vector<1x128xf32>
    %31 = tpu.concatenate %30, %26, %3 in 1 : vector<1x128xf32>, vector<1x128xf32>, vector<1x128xf32> -> vector<1x384xf32>
    %32 = arith.truncf %31 : vector<1x384xf32> to vector<1x384xbf16>
    %c0_17 = arith.constant 0 : index
    %c0_18 = arith.constant 0 : index
    %33 = vector.load %arg8[%c0_17, %c0_18] : memref<384x512xbf16, #tpu.memory_space<vmem>>, vector<384x512xbf16>
    %cst_19 = arith.constant dense<0.000000e+00> : vector<1x512xf32>
    %34 = tpu.matmul %32, %33, %cst_19 {dimension_numbers = #tpu.dot_dimension_numbers<[1], [0], [0], [1], [0, 0, 1, 1], [], []>} : vector<1x384xbf16>, vector<384x512xbf16>, vector<1x512xf32> -> vector<1x512xf32>
    %c0_20 = arith.constant 0 : index
    %c512 = arith.constant 512 : index
    %35 = vector.load %arg11[%c0_20, %c512] : memref<1x1408xf32, #tpu.memory_space<vmem>>, vector<1x512xf32>
    %36 = arith.addf %34, %35 : vector<1x512xf32>
    %37 = vector.extract_strided_slice %36 {offsets = [0, 0], sizes = [1, 128], strides = [1, 1]} : vector<1x512xf32> to vector<1x128xf32>
    %38 = arith.negf %37 : vector<1x128xf32>
    %39 = math.exp %38 : vector<1x128xf32>
    %cst_21 = arith.constant 1.000000e+00 : f32
    %40 = vector.broadcast %cst_21 : f32 to vector<1x128xf32>
    %41 = arith.addf %40, %39 : vector<1x128xf32>
    %42 = arith.divf %40, %41 : vector<1x128xf32>
    %43 = vector.extract_strided_slice %36 {offsets = [0, 128], sizes = [1, 128], strides = [1, 1]} : vector<1x512xf32> to vector<1x128xf32>
    %44 = arith.negf %43 : vector<1x128xf32>
    %45 = math.exp %44 : vector<1x128xf32>
    %cst_22 = arith.constant 1.000000e+00 : f32
    %46 = vector.broadcast %cst_22 : f32 to vector<1x128xf32>
    %47 = arith.addf %46, %45 : vector<1x128xf32>
    %48 = arith.divf %46, %47 : vector<1x128xf32>
    %49 = vector.extract_strided_slice %36 {offsets = [0, 256], sizes = [1, 128], strides = [1, 1]} : vector<1x512xf32> to vector<1x128xf32>
    %50 = math.tanh %49 : vector<1x128xf32>
    %51 = vector.extract_strided_slice %36 {offsets = [0, 384], sizes = [1, 128], strides = [1, 1]} : vector<1x512xf32> to vector<1x128xf32>
    %52 = arith.negf %51 : vector<1x128xf32>
    %53 = math.exp %52 : vector<1x128xf32>
    %cst_23 = arith.constant 1.000000e+00 : f32
    %54 = vector.broadcast %cst_23 : f32 to vector<1x128xf32>
    %55 = arith.addf %54, %53 : vector<1x128xf32>
    %56 = arith.divf %54, %55 : vector<1x128xf32>
    %57 = arith.mulf %48, %4 : vector<1x128xf32>
    %58 = arith.mulf %42, %50 : vector<1x128xf32>
    %59 = arith.addf %57, %58 : vector<1x128xf32>
    %60 = math.tanh %59 : vector<1x128xf32>
    %61 = arith.mulf %56, %60 : vector<1x128xf32>
    %c0_24 = arith.constant 0 : index
    %c0_25 = arith.constant 0 : index
    %62 = vector.load %arg15[%c0_24, %c0_25] : memref<1x128xf32, #tpu.memory_space<vmem>>, vector<1x128xf32>
    tpu.vector_store %arg15[%c0_24, %c0_25], %61 {strides = array<i32>} : memref<1x128xf32, #tpu.memory_space<vmem>>, vector<1x128xf32>,
    %c0_26 = arith.constant 0 : index
    %c0_27 = arith.constant 0 : index
    %63 = vector.load %arg16[%c0_26, %c0_27] : memref<1x128xf32, #tpu.memory_space<vmem>>, vector<1x128xf32>
    tpu.vector_store %arg16[%c0_26, %c0_27], %59 {strides = array<i32>} : memref<1x128xf32, #tpu.memory_space<vmem>>, vector<1x128xf32>,
    %64 = tpu.concatenate %61, %26 in 1 : vector<1x128xf32>, vector<1x128xf32> -> vector<1x256xf32>
    %65 = arith.truncf %64 : vector<1x256xf32> to vector<1x256xbf16>
    %c0_28 = arith.constant 0 : index
    %c0_29 = arith.constant 0 : index
    %66 = vector.load %arg9[%c0_28, %c0_29] : memref<256x128xbf16, #tpu.memory_space<vmem>>, vector<256x128xbf16>
    %cst_30 = arith.constant dense<0.000000e+00> : vector<1x128xf32>
    %67 = tpu.matmul %65, %66, %cst_30 {dimension_numbers = #tpu.dot_dimension_numbers<[1], [0], [0], [1], [0, 0, 1, 1], [], []>} : vector<1x256xbf16>, vector<256x128xbf16>, vector<1x128xf32> -> vector<1x128xf32>
    %68 = arith.addf %30, %67 : vector<1x128xf32>
    %c0_31 = arith.constant 0 : index
    %c1024 = arith.constant 1024 : index
    %69 = vector.load %arg11[%c0_31, %c1024] : memref<1x1408xf32, #tpu.memory_space<vmem>>, vector<1x128xf32>
    %70 = arith.addf %68, %69 : vector<1x128xf32>
    %71 = arith.truncf %70 : vector<1x128xf32> to vector<1x128xbf16>
    %c0_32 = arith.constant 0 : index
    %c0_33 = arith.constant 0 : index
    %72 = vector.load %arg10[%c0_32, %c0_33] : memref<128x256xbf16, #tpu.memory_space<vmem>>, vector<128x256xbf16>
    %cst_34 = arith.constant dense<0.000000e+00> : vector<1x256xf32>
    %73 = tpu.matmul %71, %72, %cst_34 {dimension_numbers = #tpu.dot_dimension_numbers<[1], [0], [0], [1], [0, 0, 1, 1], [], []>} : vector<1x128xbf16>, vector<128x256xbf16>, vector<1x256xf32> -> vector<1x256xf32>
    %c0_35 = arith.constant 0 : index
    %c1152 = arith.constant 1152 : index
    %74 = vector.load %arg11[%c0_35, %c1152] : memref<1x1408xf32, #tpu.memory_space<vmem>>, vector<1x256xf32>
    %75 = arith.addf %73, %74 : vector<1x256xf32>
    %76 = arith.index_cast %arg0 : i32 to index
    %c0_36 = arith.constant 0 : index
    %77 = vector.load %arg12[%76, %c0_36] : memref<8x256xf32, #tpu.memory_space<vmem>>, vector<1x256xf32>
    tpu.vector_store %arg12[%76, %c0_36], %75 {strides = array<i32>} : memref<8x256xf32, #tpu.memory_space<vmem>>, vector<1x256xf32>,
    %c0_37 = arith.constant 0 : index
    %c0_38 = arith.constant 0 : index
    %78 = vector.load %arg13[%c0_37, %c0_38] : memref<1x128xf32, #tpu.memory_space<vmem>>, vector<1x128xf32>
    tpu.vector_store %arg13[%c0_37, %c0_38], %61 {strides = array<i32>} : memref<1x128xf32, #tpu.memory_space<vmem>>, vector<1x128xf32>,
    %c0_39 = arith.constant 0 : index
    %c0_40 = arith.constant 0 : index
    %79 = vector.load %arg14[%c0_39, %c0_40] : memref<1x128xf32, #tpu.memory_space<vmem>>, vector<1x128xf32>
    tpu.vector_store %arg14[%c0_39, %c0_40], %59 {strides = array<i32>} : memref<1x128xf32, #tpu.memory_space<vmem>>, vector<1x128xf32>,
    return
  }
  func.func @transform_0(%arg0: i32, %arg1: memref<8xi32, #tpu.memory_space<smem>>) -> (i32, i32) {
    %c0_i32 = arith.constant 0 : i32
    %c0_i32_0 = arith.constant 0 : i32
    %c0_i32_1 = arith.constant 0 : i32
    return %c0_i32, %c0_i32_0 : i32, i32
  }
  func.func @transform_1(%arg0: i32, %arg1: memref<8xi32, #tpu.memory_space<smem>>) -> (i32, i32) {
    %c0_i32 = arith.constant 0 : i32
    %c0_i32_0 = arith.constant 0 : i32
    %c0_i32_1 = arith.constant 0 : i32
    return %c0_i32, %c0_i32_0 : i32, i32
  }
  func.func @transform_2(%arg0: i32, %arg1: memref<8xi32, #tpu.memory_space<smem>>) -> (i32, i32) {
    %c0_i32 = arith.constant 0 : i32
    %c0_i32_0 = arith.constant 0 : i32
    %c0_i32_1 = arith.constant 0 : i32
    return %c0_i32, %c0_i32_0 : i32, i32
  }
  func.func @transform_3(%arg0: i32, %arg1: memref<8xi32, #tpu.memory_space<smem>>) -> (i32, i32) {
    %c0_i32 = arith.constant 0 : i32
    %c0_i32_0 = arith.constant 0 : i32
    %c0_i32_1 = arith.constant 0 : i32
    return %c0_i32, %c0_i32_0 : i32, i32
  }
  func.func @transform_4(%arg0: i32, %arg1: memref<8xi32, #tpu.memory_space<smem>>) -> (i32, i32) {
    %c0_i32 = arith.constant 0 : i32
    %c0_i32_0 = arith.constant 0 : i32
    %c0_i32_1 = arith.constant 0 : i32
    return %c0_i32, %c0_i32_0 : i32, i32
  }
  func.func @transform_5(%arg0: i32, %arg1: memref<8xi32, #tpu.memory_space<smem>>) -> (i32, i32) {
    %c0_i32 = arith.constant 0 : i32
    %c0_i32_0 = arith.constant 0 : i32
    %c0_i32_1 = arith.constant 0 : i32
    return %c0_i32, %c0_i32_0 : i32, i32
  }
  func.func @transform_6(%arg0: i32, %arg1: memref<8xi32, #tpu.memory_space<smem>>) -> (i32, i32) {
    %c0_i32 = arith.constant 0 : i32
    %c0_i32_0 = arith.constant 0 : i32
    %c0_i32_1 = arith.constant 0 : i32
    return %c0_i32, %c0_i32_0 : i32, i32
  }
  func.func @transform_7(%arg0: i32, %arg1: memref<8xi32, #tpu.memory_space<smem>>) -> (i32, i32) {
    %c0_i32 = arith.constant 0 : i32
    %c0_i32_0 = arith.constant 0 : i32
    %c0_i32_1 = arith.constant 0 : i32
    return %c0_i32, %c0_i32_0 : i32, i32
  }
  func.func @transform_8(%arg0: i32, %arg1: memref<8xi32, #tpu.memory_space<smem>>) -> (i32, i32) {
    %c0_i32 = arith.constant 0 : i32
    %c0_i32_0 = arith.constant 0 : i32
    %c0_i32_1 = arith.constant 0 : i32
    return %c0_i32, %c0_i32_0 : i32, i32
  }
  func.func @transform_9(%arg0: i32, %arg1: memref<8xi32, #tpu.memory_space<smem>>) -> (i32, i32) {
    %c0_i32 = arith.constant 0 : i32
    %c0_i32_0 = arith.constant 0 : i32
    %c0_i32_1 = arith.constant 0 : i32
    return %c0_i32, %c0_i32_0 : i32, i32
  }
  func.func @transform_10(%arg0: i32, %arg1: memref<8xi32, #tpu.memory_space<smem>>) -> (i32, i32) {
    %c0_i32 = arith.constant 0 : i32
    %c0_i32_0 = arith.constant 0 : i32
    %c0_i32_1 = arith.constant 0 : i32
    return %c0_i32, %c0_i32_0 : i32, i32
  }
  func.func @transform_11(%arg0: i32, %arg1: memref<8xi32, #tpu.memory_space<smem>>) -> (i32, i32) {
    %c0_i32 = arith.constant 0 : i32
    %c0_i32_0 = arith.constant 0 : i32
    %c0_i32_1 = arith.constant 0 : i32
    return %c0_i32, %c0_i32_0 : i32, i32
  }
  func.func @transform_12(%arg0: i32, %arg1: memref<8xi32, #tpu.memory_space<smem>>) -> (i32, i32) {
    %c0_i32 = arith.constant 0 : i32
    %c0_i32_0 = arith.constant 0 : i32
    %c0_i32_1 = arith.constant 0 : i32
    return %c0_i32, %c0_i32_0 : i32, i32
  }
}

</mosaic_0001>

<llo_original>
// kernel: tpu_custom_call.1
$region0: #{tpu_custom_call.1}
  #allocation0 [shape = 'u32[]', space=smem, size = 0x4, offset = 0x4, fixed_abs, tag = 'smem constant byte address 0x4 - core index']
  #allocation1 [shape = 'u32[144,128]{1,0:T(1,128)}', space=vmem, size = 0x12000, scoped, tag = 'internal scratch']
  #allocation2 [shape = 'f32[1,128]{1,0:T(1,128)}', space=vmem, size = 0x200, scoped, tag = 'scratch operand']
  #allocation3 [shape = 'f32[1,128]{1,0:T(1,128)}', space=vmem, size = 0x200, scoped, tag = 'scratch operand']
  #allocation4 [shape = 'f32[16,128]{1,0:T(8,128)}', space=vmem, size = 0x2000, scoped, tag = 'scratch operand']
  #allocation5 [shape = 's32[1]{0}', space=sflag, size = 0x4, scoped, tag = 'scoped memory for tpu_custom_call.1']
  #allocation6 [shape = 'u8[512]{0}', space=smem, size = 0x200, scoped, tag = 'prefetched SMEM operand 0']
  %s0 = inlined_call_operand.hbm [shape: s32[8], index: 0, kind: input, shape index: {}]
  %s1 = inlined_call_operand.hbm [shape: bf16[16,128], index: 1, kind: input, shape index: {}]
  %s2 = inlined_call_operand.hbm [shape: f32[256,128], index: 2, kind: input, shape index: {}]
  %s3 = inlined_call_operand.hbm [shape: bf16[128,256], index: 3, kind: input, shape index: {}]
  %s4 = inlined_call_operand.hbm [shape: bf16[128,128], index: 4, kind: input, shape index: {}]
  %s5 = inlined_call_operand.hbm [shape: bf16[128,128], index: 5, kind: input, shape index: {}]
  %s6 = inlined_call_operand.vmem [shape: bf16[1,128], index: 6, kind: input, shape index: {}]
  %s7 = inlined_call_operand.hbm [shape: bf16[384,512], index: 7, kind: input, shape index: {}]
  %s8 = inlined_call_operand.hbm [shape: bf16[256,128], index: 8, kind: input, shape index: {}]
  %s9 = inlined_call_operand.hbm [shape: bf16[128,256], index: 9, kind: input, shape index: {}]
  %s10 = inlined_call_operand.vmem [shape: f32[1,1408], index: 10, kind: input, shape index: {}]
  %s11 = inlined_call_operand.hbm [shape: f32[8,256], index: 11, kind: output, shape index: {0}]
  %s12 = inlined_call_operand.hbm [shape: f32[1,128], index: 12, kind: output, shape index: {1}]
  %s13 = inlined_call_operand.hbm [shape: f32[1,128], index: 13, kind: output, shape index: {2}]
  %14 = xla_tuple %s11, %s12, %s13
  %s15 = sld [smem:[#allocation0]]
  $region125: #{tpu_custom_call.1} parent=0
    _
  %s17 = ssub.s32 1, %s15
  %s18 = scalar_select 0, %s17, %s15
  %20 = dma.hbm_to_smem %s0, 16, [#allocation6], [#allocation5]
  %21 = dma.done [#allocation5], 16
  %22 = sfence
  $region1: #{tpu_custom_call.1} parent=0
    #allocation7 [shape = 'u8[4096]{0}', space=vmem, size = 0x1000, scoped, tag = 'input window, operand 1, single buffered']
    #allocation8 [shape = 's32[2]{0}', space=sflag, size = 0x8, scoped, tag = 'scoped memory for tpu_custom_call.1']
    #allocation9 [shape = 's32[2]{0}', space=sflag, size = 0x8, scoped, tag = 'scoped memory for tpu_custom_call.1']
    #allocation10 [shape = 'u8[131072]{0}', space=vmem, size = 0x20000, scoped, tag = 'input window, operand 2, single buffered']
    #allocation11 [shape = 's32[1]{0}', space=sflag, size = 0x4, scoped, tag = 'scoped memory for tpu_custom_call.1']
    #allocation12 [shape = 'u8[65536]{0}', space=vmem, size = 0x10000, scoped, tag = 'input window, operand 3, single buffered']
    #allocation13 [shape = 'u8[32768]{0}', space=vmem, size = 0x8000, scoped, tag = 'input window, operand 4, single buffered']
    #allocation14 [shape = 's32[1]{0}', space=sflag, size = 0x4, scoped, tag = 'scoped memory for tpu_custom_call.1']
    #allocation15 [shape = 'u8[32768]{0}', space=vmem, size = 0x8000, scoped, tag = 'input window, operand 5, single buffered']
    #allocation16 [shape = 'u8[393216]{0}', space=vmem, size = 0x60000, scoped, tag = 'input window, operand 7, single buffered']
    #allocation17 [shape = 's32[1]{0}', space=sflag, size = 0x4, scoped, tag = 'scoped memory for tpu_custom_call.1']
    #allocation18 [shape = 'u8[65536]{0}', space=vmem, size = 0x10000, scoped, tag = 'input window, operand 8, single buffered']
    #allocation19 [shape = 'u8[65536]{0}', space=vmem, size = 0x10000, scoped, tag = 'input window, operand 9, single buffered']
    #allocation20 [shape = 's32[1]{0}', space=sflag, size = 0x4, scoped, tag = 'scoped memory for tpu_custom_call.1']
    #allocation21 [shape = 'u8[8192]{0}', space=vmem, size = 0x2000, scoped, tag = 'output window, operand 0, single buffered']
    #allocation22 [shape = 'u8[512]{0}', space=vmem, size = 0x400, scoped, tag = 'output window, operand 1, single buffered']
    #allocation23 [shape = 's32[1]{0}', space=sflag, size = 0x4, scoped, tag = 'scoped memory for tpu_custom_call.1']
    #allocation24 [shape = 'u8[512]{0}', space=vmem, size = 0x400, scoped, tag = 'output window, operand 2, single buffered']
    %23 = vsyncpa [#allocation8], 0
    %24 = vsyncpa [#allocation11], 0
    %25 = vsyncpa [#allocation14], 0
    %26 = vsyncpa [#allocation17], 0
    %27 = vsyncpa [#allocation20], 0
    %28 = vsyncpa [#allocation9], 0
    %29 = vsyncpa [#allocation23], 0
    loop: start=0, step=1, limit=10
    $region2: #{tpu_custom_call.1} parent=1 // loop_pre_header
      _
    $region3: #{tpu_custom_call.1} parent=1 // loop_header
      %s31 = sphi 0, %s35
      %p32 = scmp.ge.s32.totalorder %s31, 10
      %s39 = sphi 0, %s39
      %s41 = sphi 0, %s39
      %s42 = sphi 0, %s41
      %s56 = sphi 0, %s42
      %s60 = sphi 0, %s60
      %s62 = sphi 0, %s60
      %s63 = sphi 0, %s62
      %s77 = sphi 0, %s63
      %s81 = sphi 0, %s81
      %s83 = sphi 0, %s81
      %s84 = sphi 0, %s83
      %s98 = sphi 0, %s84
      %s102 = sphi 0, %s102
      %s104 = sphi 0, %s102
      %s105 = sphi 0, %s104
      %s119 = sphi 0, %s105
      %s123 = sphi 0, %s123
      %s125 = sphi 0, %s123
      %s126 = sphi 0, %s125
      %s140 = sphi 0, %s126
      %s144 = sphi 0, %s144
      %s146 = sphi 0, %s144
      %s147 = sphi 0, %s146
      %s161 = sphi 0, %s147
      %s165 = sphi 0, %s165
      %s167 = sphi 0, %s165
      %s168 = sphi 0, %s167
      %s182 = sphi 0, %s168
      %s186 = sphi 0, %s186
      %s188 = sphi 0, %s186
      %s189 = sphi 0, %s188
      %s203 = sphi 0, %s189
      %s207 = sphi 0, %s207
      %s209 = sphi 0, %s207
      %s210 = sphi 0, %s209
      %s224 = sphi 0, %s210
      %s228 = sphi 0, %s228
      %s230 = sphi 0, %s228
      %s231 = sphi 0, %s230
      %s245 = sphi 0, %s231
      %s249 = sphi 0, %s249
      %s251 = sphi 0, %s249
      %s252 = sphi 0, %s251
      %s266 = sphi 0, %s252
      %s270 = sphi 0, %s270
      %s272 = sphi 0, %s270
      %s273 = sphi 0, %s272
      %s287 = sphi 0, %s273
      %s291 = sphi 0, %s291
      %s293 = sphi 0, %s291
      %s294 = sphi 0, %s293
      %s308 = sphi 0, %s294
    $region4: #{tpu_custom_call.1} parent=1 // loop_header_branch
      %34 = sbr.rel (%p32) target = $region8
    $region5: #{tpu_custom_call.1} parent=1 // loop_body
      %s36 = ssub.s32 %s31, 1
      %s37 = ssub.s32 %s31, 2
      %s38 = sadd.s32 %s31, 1
      %s40 = sadd.s32 %s39, 1
      %p43 = scmp.eq.s32.totalorder %s31, 7
      %p44 = scmp.ne.s32.totalorder %s39, %s41
      %p45 = scmp.eq.s32.totalorder %s31, 0
      %p46 = por %p44, %p45
      %p47 = scmp.ne.s32.totalorder %s39, %s41
      %p48 = scmp.eq.s32.totalorder %s36, 7
      %p49 = por %p47, %p48
      %p50 = scmp.ne.s32.totalorder %s41, %s42
      %p51 = scmp.eq.s32.totalorder %s36, 0
      %p52 = por %p50, %p51
      %p53 = scmp.ne.s32.totalorder %s41, %s42
      %p54 = scmp.eq.s32.totalorder %s37, 7
      %p55 = por %p53, %p54
      %p57 = scmp.ne.s32.totalorder %s42, %s56
      %p58 = scmp.eq.s32.totalorder %s37, 0
      %p59 = por %p57, %p58
      %s61 = sadd.s32 %s60, 1
      %p64 = scmp.eq.s32.totalorder %s31, 7
      %p65 = scmp.ne.s32.totalorder %s60, %s62
      %p66 = scmp.eq.s32.totalorder %s31, 0
      %p67 = por %p65, %p66
      %p68 = scmp.ne.s32.totalorder %s60, %s62
      %p69 = scmp.eq.s32.totalorder %s36, 7
      %p70 = por %p68, %p69
      %p71 = scmp.ne.s32.totalorder %s62, %s63
      %p72 = scmp.eq.s32.totalorder %s36, 0
      %p73 = por %p71, %p72
      %p74 = scmp.ne.s32.totalorder %s62, %s63
      %p75 = scmp.eq.s32.totalorder %s37, 7
      %p76 = por %p74, %p75
      %p78 = scmp.ne.s32.totalorder %s63, %s77
      %p79 = scmp.eq.s32.totalorder %s37, 0
      %p80 = por %p78, %p79
      %s82 = sadd.s32 %s81, 1
      %p85 = scmp.eq.s32.totalorder %s31, 7
      %p86 = scmp.ne.s32.totalorder %s81, %s83
      %p87 = scmp.eq.s32.totalorder %s31, 0
      %p88 = por %p86, %p87
      %p89 = scmp.ne.s32.totalorder %s81, %s83
      %p90 = scmp.eq.s32.totalorder %s36, 7
      %p91 = por %p89, %p90
      %p92 = scmp.ne.s32.totalorder %s83, %s84
      %p93 = scmp.eq.s32.totalorder %s36, 0
      %p94 = por %p92, %p93
      %p95 = scmp.ne.s32.totalorder %s83, %s84
      %p96 = scmp.eq.s32.totalorder %s37, 7
      %p97 = por %p95, %p96
      %p99 = scmp.ne.s32.totalorder %s84, %s98
      %p100 = scmp.eq.s32.totalorder %s37, 0
      %p101 = por %p99, %p100
      %s103 = sadd.s32 %s102, 1
      %p106 = scmp.eq.s32.totalorder %s31, 7
      %p107 = scmp.ne.s32.totalorder %s102, %s104
      %p108 = scmp.eq.s32.totalorder %s31, 0
      %p109 = por %p107, %p108
      %p110 = scmp.ne.s32.totalorder %s102, %s104
      %p111 = scmp.eq.s32.totalorder %s36, 7
      %p112 = por %p110, %p111
      %p113 = scmp.ne.s32.totalorder %s104, %s105
      %p114 = scmp.eq.s32.totalorder %s36, 0
      %p115 = por %p113, %p114
      %p116 = scmp.ne.s32.totalorder %s104, %s105
      %p117 = scmp.eq.s32.totalorder %s37, 7
      %p118 = por %p116, %p117
      %p120 = scmp.ne.s32.totalorder %s105, %s119
      %p121 = scmp.eq.s32.totalorder %s37, 0
      %p122 = por %p120, %p121
      %s124 = sadd.s32 %s123, 1
      %p127 = scmp.eq.s32.totalorder %s31, 7
      %p128 = scmp.ne.s32.totalorder %s123, %s125
      %p129 = scmp.eq.s32.totalorder %s31, 0
      %p130 = por %p128, %p129
      %p131 = scmp.ne.s32.totalorder %s123, %s125
      %p132 = scmp.eq.s32.totalorder %s36, 7
      %p133 = por %p131, %p132
      %p134 = scmp.ne.s32.totalorder %s125, %s126
      %p135 = scmp.eq.s32.totalorder %s36, 0
      %p136 = por %p134, %p135
      %p137 = scmp.ne.s32.totalorder %s125, %s126
      %p138 = scmp.eq.s32.totalorder %s37, 7
      %p139 = por %p137, %p138
      %p141 = scmp.ne.s32.totalorder %s126, %s140
      %p142 = scmp.eq.s32.totalorder %s37, 0
      %p143 = por %p141, %p142
      %s145 = sadd.s32 %s144, 1
      %p148 = scmp.eq.s32.totalorder %s31, 7
      %p149 = scmp.ne.s32.totalorder %s144, %s146
      %p150 = scmp.eq.s32.totalorder %s31, 0
      %p151 = por %p149, %p150
      %p152 = scmp.ne.s32.totalorder %s144, %s146
      %p153 = scmp.eq.s32.totalorder %s36, 7
      %p154 = por %p152, %p153
      %p155 = scmp.ne.s32.totalorder %s146, %s147
      %p156 = scmp.eq.s32.totalorder %s36, 0
      %p157 = por %p155, %p156
      %p158 = scmp.ne.s32.totalorder %s146, %s147
      %p159 = scmp.eq.s32.totalorder %s37, 7
      %p160 = por %p158, %p159
      %p162 = scmp.ne.s32.totalorder %s147, %s161
      %p163 = scmp.eq.s32.totalorder %s37, 0
      %p164 = por %p162, %p163
      %s166 = sadd.s32 %s165, 1
      %p169 = scmp.eq.s32.totalorder %s31, 7
      %p170 = scmp.ne.s32.totalorder %s165, %s167
      %p171 = scmp.eq.s32.totalorder %s31, 0
      %p172 = por %p170, %p171
      %p173 = scmp.ne.s32.totalorder %s165, %s167
      %p174 = scmp.eq.s32.totalorder %s36, 7
      %p175 = por %p173, %p174
      %p176 = scmp.ne.s32.totalorder %s167, %s168
      %p177 = scmp.eq.s32.totalorder %s36, 0
      %p178 = por %p176, %p177
      %p179 = scmp.ne.s32.totalorder %s167, %s168
      %p180 = scmp.eq.s32.totalorder %s37, 7
      %p181 = por %p179, %p180
      %p183 = scmp.ne.s32.totalorder %s168, %s182
      %p184 = scmp.eq.s32.totalorder %s37, 0
      %p185 = por %p183, %p184
      %s187 = sadd.s32 %s186, 1
      %p190 = scmp.eq.s32.totalorder %s31, 7
      %p191 = scmp.ne.s32.totalorder %s186, %s188
      %p192 = scmp.eq.s32.totalorder %s31, 0
      %p193 = por %p191, %p192
      %p194 = scmp.ne.s32.totalorder %s186, %s188
      %p195 = scmp.eq.s32.totalorder %s36, 7
      %p196 = por %p194, %p195
      %p197 = scmp.ne.s32.totalorder %s188, %s189
      %p198 = scmp.eq.s32.totalorder %s36, 0
      %p199 = por %p197, %p198
      %p200 = scmp.ne.s32.totalorder %s188, %s189
      %p201 = scmp.eq.s32.totalorder %s37, 7
      %p202 = por %p200, %p201
      %p204 = scmp.ne.s32.totalorder %s189, %s203
      %p205 = scmp.eq.s32.totalorder %s37, 0
      %p206 = por %p204, %p205
      %s208 = sadd.s32 %s207, 1
      %p211 = scmp.eq.s32.totalorder %s31, 7
      %p212 = scmp.ne.s32.totalorder %s207, %s209
      %p213 = scmp.eq.s32.totalorder %s31, 0
      %p214 = por %p212, %p213
      %p215 = scmp.ne.s32.totalorder %s207, %s209
      %p216 = scmp.eq.s32.totalorder %s36, 7
      %p217 = por %p215, %p216
      %p218 = scmp.ne.s32.totalorder %s209, %s210
      %p219 = scmp.eq.s32.totalorder %s36, 0
      %p220 = por %p218, %p219
      %p221 = scmp.ne.s32.totalorder %s209, %s210
      %p222 = scmp.eq.s32.totalorder %s37, 7
      %p223 = por %p221, %p222
      %p225 = scmp.ne.s32.totalorder %s210, %s224
      %p226 = scmp.eq.s32.totalorder %s37, 0
      %p227 = por %p225, %p226
      %s229 = sadd.s32 %s228, 1
      %p232 = scmp.eq.s32.totalorder %s31, 7
      %p233 = scmp.ne.s32.totalorder %s228, %s230
      %p234 = scmp.eq.s32.totalorder %s31, 0
      %p235 = por %p233, %p234
      %p236 = scmp.ne.s32.totalorder %s228, %s230
      %p237 = scmp.eq.s32.totalorder %s36, 7
      %p238 = por %p236, %p237
      %p239 = scmp.ne.s32.totalorder %s230, %s231
      %p240 = scmp.eq.s32.totalorder %s36, 0
      %p241 = por %p239, %p240
      %p242 = scmp.ne.s32.totalorder %s230, %s231
      %p243 = scmp.eq.s32.totalorder %s37, 7
      %p244 = por %p242, %p243
      %p246 = scmp.ne.s32.totalorder %s231, %s245
      %p247 = scmp.eq.s32.totalorder %s37, 0
      %p248 = por %p246, %p247
      %s250 = sadd.s32 %s249, 1
      %p253 = scmp.eq.s32.totalorder %s31, 7
      %p254 = scmp.ne.s32.totalorder %s249, %s251
      %p255 = scmp.eq.s32.totalorder %s31, 0
      %p256 = por %p254, %p255
      %p257 = scmp.ne.s32.totalorder %s249, %s251
      %p258 = scmp.eq.s32.totalorder %s36, 7
      %p259 = por %p257, %p258
      %p260 = scmp.ne.s32.totalorder %s251, %s252
      %p261 = scmp.eq.s32.totalorder %s36, 0
      %p262 = por %p260, %p261
      %p263 = scmp.ne.s32.totalorder %s251, %s252
      %p264 = scmp.eq.s32.totalorder %s37, 7
      %p265 = por %p263, %p264
      %p267 = scmp.ne.s32.totalorder %s252, %s266
      %p268 = scmp.eq.s32.totalorder %s37, 0
      %p269 = por %p267, %p268
      %s271 = sadd.s32 %s270, 1
      %p274 = scmp.eq.s32.totalorder %s31, 7
      %p275 = scmp.ne.s32.totalorder %s270, %s272
      %p276 = scmp.eq.s32.totalorder %s31, 0
      %p277 = por %p275, %p276
      %p278 = scmp.ne.s32.totalorder %s270, %s272
      %p279 = scmp.eq.s32.totalorder %s36, 7
      %p280 = por %p278, %p279
      %p281 = scmp.ne.s32.totalorder %s272, %s273
      %p282 = scmp.eq.s32.totalorder %s36, 0
      %p283 = por %p281, %p282
      %p284 = scmp.ne.s32.totalorder %s272, %s273
      %p285 = scmp.eq.s32.totalorder %s37, 7
      %p286 = por %p284, %p285
      %p288 = scmp.ne.s32.totalorder %s273, %s287
      %p289 = scmp.eq.s32.totalorder %s37, 0
      %p290 = por %p288, %p289
      %s292 = sadd.s32 %s291, 1
      %p295 = scmp.eq.s32.totalorder %s31, 7
      %p296 = scmp.ne.s32.totalorder %s291, %s293
      %p297 = scmp.eq.s32.totalorder %s31, 0
      %p298 = por %p296, %p297
      %p299 = scmp.ne.s32.totalorder %s291, %s293
      %p300 = scmp.eq.s32.totalorder %s36, 7
      %p301 = por %p299, %p300
      %p302 = scmp.ne.s32.totalorder %s293, %s294
      %p303 = scmp.eq.s32.totalorder %s36, 0
      %p304 = por %p302, %p303
      %p305 = scmp.ne.s32.totalorder %s293, %s294
      %p306 = scmp.eq.s32.totalorder %s37, 7
      %p307 = por %p305, %p306
      %p309 = scmp.ne.s32.totalorder %s294, %s308
      %p310 = scmp.eq.s32.totalorder %s37, 0
      %p311 = por %p309, %p310
      %p312 = scmp.le.s32.totalorder 1, %s31
      %p313 = scmp.lt.s32.totalorder %s31, 9
      %p314 = pnand %p312, %p313
      %p315 = pneg %p314
      // Predicated region
      $region9: #{tpu_custom_call.1} parent=5 // pred_check
        _
      $region10: #{tpu_custom_call.1} parent=5 // pred_check_branch
        %317 = sbr.rel (%p314) target = $region12
      $region11: #{tpu_custom_call.1} parent=5 // pred_region
        %s318 = ssub.s32 %s31, 1
        // Predicated region
        $region13: #{tpu_custom_call.1} parent=11 // pred_check
          %p319 = pneg %p52
        $region14: #{tpu_custom_call.1} parent=11 // pred_check_branch
          %321 = sbr.rel (%p319) target = $region16
        $region15: #{tpu_custom_call.1} parent=11 // pred_region
          %s323 = ssub.s32 128, 128
          %324 = vsyncadd [#allocation8], %s323
          %s325 = sshll.u32 [#allocation7], 4
          %s326 = int_to_ptr.vmem [resolvable:$true] %s325
          %331 = dma.hbm_to_vmem [thread:$0]  %s1, 128, %s326, [#allocation8], 64, 64, 4
        $region16: #{tpu_custom_call.1} parent=11 // pred_fallthru
          _
        // Predicated region
        $region17: #{tpu_custom_call.1} parent=11 // pred_check
          %p332 = pneg %p73
        $region18: #{tpu_custom_call.1} parent=11 // pred_check_branch
          %334 = sbr.rel (%p332) target = $region20
        $region19: #{tpu_custom_call.1} parent=11 // pred_region
          %s336 = ssub.s32 4096, 4096
          %337 = vsyncadd [#allocation11], %s336
          %s338 = sshll.u32 [#allocation10], 4
          %s339 = int_to_ptr.vmem [resolvable:$true] %s338
          %344 = dma.hbm_to_vmem [thread:$0]  %s2, 4096, %s339, [#allocation11], 128, 128, 8
        $region20: #{tpu_custom_call.1} parent=11 // pred_fallthru
          _
        // Predicated region
        $region21: #{tpu_custom_call.1} parent=11 // pred_check
          %p345 = pneg %p94
        $region22: #{tpu_custom_call.1} parent=11 // pred_check_branch
          %347 = sbr.rel (%p345) target = $region24
        $region23: #{tpu_custom_call.1} parent=11 // pred_region
          %s349 = ssub.s32 2048, 2048
          %350 = vsyncadd [#allocation11], %s349
          %s351 = sshll.u32 [#allocation12], 4
          %s352 = int_to_ptr.vmem [resolvable:$true] %s351
          %357 = dma.hbm_to_vmem [thread:$0]  %s3, 2048, %s352, [#allocation11], 128, 128, 8
        $region24: #{tpu_custom_call.1} parent=11 // pred_fallthru
          _
        // Predicated region
        $region25: #{tpu_custom_call.1} parent=11 // pred_check
          %p358 = pneg %p115
        $region26: #{tpu_custom_call.1} parent=11 // pred_check_branch
          %360 = sbr.rel (%p358) target = $region28
        $region27: #{tpu_custom_call.1} parent=11 // pred_region
          %s362 = ssub.s32 1024, 1024
          %363 = vsyncadd [#allocation14], %s362
          %s364 = sshll.u32 [#allocation13], 4
          %s365 = int_to_ptr.vmem [resolvable:$true] %s364
          %370 = dma.hbm_to_vmem [thread:$0]  %s4, 1024, %s365, [#allocation14], 64, 64, 4
        $region28: #{tpu_custom_call.1} parent=11 // pred_fallthru
          _
        // Predicated region
        $region29: #{tpu_custom_call.1} parent=11 // pred_check
          %p371 = pneg %p136
        $region30: #{tpu_custom_call.1} parent=11 // pred_check_branch
          %373 = sbr.rel (%p371) target = $region32
        $region31: #{tpu_custom_call.1} parent=11 // pred_region
          %s375 = ssub.s32 1024, 1024
          %376 = vsyncadd [#allocation14], %s375
          %s377 = sshll.u32 [#allocation15], 4
          %s378 = int_to_ptr.vmem [resolvable:$true] %s377
          %383 = dma.hbm_to_vmem [thread:$0]  %s5, 1024, %s378, [#allocation14], 64, 64, 4
        $region32: #{tpu_custom_call.1} parent=11 // pred_fallthru
          _
        // Predicated region
        $region33: #{tpu_custom_call.1} parent=11 // pred_check
          %p384 = pneg %p157
        $region34: #{tpu_custom_call.1} parent=11 // pred_check_branch
          %386 = sbr.rel (%p384) target = $region36
        $region35: #{tpu_custom_call.1} parent=11 // pred_region
          _
        $region36: #{tpu_custom_call.1} parent=11 // pred_fallthru
          _
        // Predicated region
        $region37: #{tpu_custom_call.1} parent=11 // pred_check
          %p387 = pneg %p178
        $region38: #{tpu_custom_call.1} parent=11 // pred_check_branch
          %389 = sbr.rel (%p387) target = $region40
        $region39: #{tpu_custom_call.1} parent=11 // pred_region
          %s391 = ssub.s32 12288, 12288
          %392 = vsyncadd [#allocation17], %s391
          %s393 = sshll.u32 [#allocation16], 4
          %s394 = int_to_ptr.vmem [resolvable:$true] %s393
          %399 = dma.hbm_to_vmem [thread:$0]  %s7, 12288, %s394, [#allocation17], 256, 256, 16
        $region40: #{tpu_custom_call.1} parent=11 // pred_fallthru
          _
        // Predicated region
        $region41: #{tpu_custom_call.1} parent=11 // pred_check
          %p400 = pneg %p199
        $region42: #{tpu_custom_call.1} parent=11 // pred_check_branch
          %402 = sbr.rel (%p400) target = $region44
        $region43: #{tpu_custom_call.1} parent=11 // pred_region
          %s404 = ssub.s32 2048, 2048
          %405 = vsyncadd [#allocation17], %s404
          %s406 = sshll.u32 [#allocation18], 4
          %s407 = int_to_ptr.vmem [resolvable:$true] %s406
          %412 = dma.hbm_to_vmem [thread:$0]  %s8, 2048, %s407, [#allocation17], 64, 64, 4
        $region44: #{tpu_custom_call.1} parent=11 // pred_fallthru
          _
        // Predicated region
        $region45: #{tpu_custom_call.1} parent=11 // pred_check
          %p413 = pneg %p220
        $region46: #{tpu_custom_call.1} parent=11 // pred_check_branch
          %415 = sbr.rel (%p413) target = $region48
        $region47: #{tpu_custom_call.1} parent=11 // pred_region
          %s417 = ssub.s32 2048, 2048
          %418 = vsyncadd [#allocation20], %s417
          %s419 = sshll.u32 [#allocation19], 4
          %s420 = int_to_ptr.vmem [resolvable:$true] %s419
          %425 = dma.hbm_to_vmem [thread:$0]  %s9, 2048, %s420, [#allocation20], 128, 128, 8
        $region48: #{tpu_custom_call.1} parent=11 // pred_fallthru
          _
        // Predicated region
        $region49: #{tpu_custom_call.1} parent=11 // pred_check
          %p426 = pneg %p241
        $region50: #{tpu_custom_call.1} parent=11 // pred_check_branch
          %428 = sbr.rel (%p426) target = $region52
        $region51: #{tpu_custom_call.1} parent=11 // pred_region
          _
        $region52: #{tpu_custom_call.1} parent=11 // pred_fallthru
          _
      $region12: #{tpu_custom_call.1} parent=5 // pred_fallthru
        _
      %p429 = scmp.lt.s32.totalorder %s31, 8
      // Predicated region
      $region53: #{tpu_custom_call.1} parent=5 // pred_check
        %p430 = pneg %p429
      $region54: #{tpu_custom_call.1} parent=5 // pred_check_branch
        %432 = sbr.rel (%p430) target = $region56
      $region55: #{tpu_custom_call.1} parent=5 // pred_region
        _
      $region56: #{tpu_custom_call.1} parent=5 // pred_fallthru
        _
      %p433 = scmp.le.s32.totalorder 1, %s31
      %p434 = scmp.lt.s32.totalorder %s31, 9
      %p435 = pnand %p433, %p434
      %p436 = pneg %p435
      // Predicated region
      $region57: #{tpu_custom_call.1} parent=5 // pred_check
        _
      $region58: #{tpu_custom_call.1} parent=5 // pred_check_branch
        %438 = sbr.rel (%p435) target = $region60
      $region59: #{tpu_custom_call.1} parent=5 // pred_region
        %s439 = ssub.s32 %s31, 1
        // Predicated region
        $region61: #{tpu_custom_call.1} parent=59 // pred_check
          %p440 = pneg %p52
        $region62: #{tpu_custom_call.1} parent=59 // pred_check_branch
          %442 = sbr.rel (%p440) target = $region64
        $region63: #{tpu_custom_call.1} parent=59 // pred_region
          %443 = dma.done [#allocation8], 128
        $region64: #{tpu_custom_call.1} parent=59 // pred_fallthru
          _
        // Predicated region
        $region65: #{tpu_custom_call.1} parent=59 // pred_check
          %p444 = pneg %p73
        $region66: #{tpu_custom_call.1} parent=59 // pred_check_branch
          %446 = sbr.rel (%p444) target = $region68
        $region67: #{tpu_custom_call.1} parent=59 // pred_region
          %447 = dma.done [#allocation11], 4096
        $region68: #{tpu_custom_call.1} parent=59 // pred_fallthru
          _
        // Predicated region
        $region69: #{tpu_custom_call.1} parent=59 // pred_check
          %p448 = pneg %p94
        $region70: #{tpu_custom_call.1} parent=59 // pred_check_branch
          %450 = sbr.rel (%p448) target = $region72
        $region71: #{tpu_custom_call.1} parent=59 // pred_region
          %451 = dma.done [#allocation11], 2048
        $region72: #{tpu_custom_call.1} parent=59 // pred_fallthru
          _
        // Predicated region
        $region73: #{tpu_custom_call.1} parent=59 // pred_check
          %p452 = pneg %p115
        $region74: #{tpu_custom_call.1} parent=59 // pred_check_branch
          %454 = sbr.rel (%p452) target = $region76
        $region75: #{tpu_custom_call.1} parent=59 // pred_region
          %455 = dma.done [#allocation14], 1024
        $region76: #{tpu_custom_call.1} parent=59 // pred_fallthru
          _
        // Predicated region
        $region77: #{tpu_custom_call.1} parent=59 // pred_check
          %p456 = pneg %p136
        $region78: #{tpu_custom_call.1} parent=59 // pred_check_branch
          %458 = sbr.rel (%p456) target = $region80
        $region79: #{tpu_custom_call.1} parent=59 // pred_region
          %459 = dma.done [#allocation14], 1024
        $region80: #{tpu_custom_call.1} parent=59 // pred_fallthru
          _
        // Predicated region
        $region81: #{tpu_custom_call.1} parent=59 // pred_check
          %p460 = pneg %p178
        $region82: #{tpu_custom_call.1} parent=59 // pred_check_branch
          %462 = sbr.rel (%p460) target = $region84
        $region83: #{tpu_custom_call.1} parent=59 // pred_region
          %463 = dma.done [#allocation17], 12288
        $region84: #{tpu_custom_call.1} parent=59 // pred_fallthru
          _
        // Predicated region
        $region85: #{tpu_custom_call.1} parent=59 // pred_check
          %p464 = pneg %p199
        $region86: #{tpu_custom_call.1} parent=59 // pred_check_branch
          %466 = sbr.rel (%p464) target = $region88
        $region87: #{tpu_custom_call.1} parent=59 // pred_region
          %467 = dma.done [#allocation17], 2048
        $region88: #{tpu_custom_call.1} parent=59 // pred_fallthru
          _
        // Predicated region
        $region89: #{tpu_custom_call.1} parent=59 // pred_check
          %p468 = pneg %p220
        $region90: #{tpu_custom_call.1} parent=59 // pred_check_branch
          %470 = sbr.rel (%p468) target = $region92
        $region91: #{tpu_custom_call.1} parent=59 // pred_region
          %471 = dma.done [#allocation20], 2048
        $region92: #{tpu_custom_call.1} parent=59 // pred_fallthru
          _
        %p472 = pneg %p52
        %p473 = pneg %p49
        %p474 = pneg %p73
        %p475 = pneg %p70
        %p476 = pneg %p94
        %p477 = pneg %p91
        %p478 = pneg %p115
        %p479 = pneg %p112
        %p480 = pneg %p136
        %p481 = pneg %p133
        %p482 = pneg %p157
        %p483 = pneg %p154
        %p484 = pneg %p178
        %p485 = pneg %p175
        %p486 = pneg %p199
        %p487 = pneg %p196
        %p488 = pneg %p220
        %p489 = pneg %p217
        %p490 = pneg %p241
        %p491 = pneg %p238
        %p492 = pneg %p262
        %p493 = pneg %p259
        %p494 = pneg %p283
        %p495 = pneg %p280
        %p496 = pneg %p304
        %p497 = pneg %p301
        %p499 = scmp.eq.s32.totalorder %s36, 0
        // Predicated region
        $region93: #{tpu_custom_call.1} parent=59 // pred_check
          %p500 = pneg %p499
        $region94: #{tpu_custom_call.1} parent=59 // pred_check_branch
          %502 = sbr.rel (%p500) target = $region96
        $region95: #{tpu_custom_call.1} parent=59 // pred_region
          %v503 = vld [vmem:[#allocation7] sm:$0xf]
          %v504 = vld [vmem:[#allocation7 + $0x4] sm:$0xf]
          %v505 = vunpack.c.l.bf16 %v503
          %v506 = vunpack.c.l.bf16 %v504
          %v507 = vadd.f32 %v505, %v506
          %v508 = vrot.slane %v507, 4
          %v509 = vadd.f32 %v507, %v508
          %v510 = vrot.slane %v509, 2
          %v511 = vadd.f32 %v509, %v510
          %v512 = vrot.slane %v511, 1
          %v513 = vadd.f32 %v511, %v512
          %v514 = vrcp.pop 16.0
          %v515 = vmul.f32 %v513, %v514
          %v516 = vpack.c.bf16 %v515, %v515
          %v517 = vld [vmem:[#allocation12] sm:$0xff]
          %v518 = vld [vmem:[#allocation12 + $0x8] sm:$0xff]
          %v519 = vld [vmem:[#allocation12 + $0x10] sm:$0xff]
          %v520 = vld [vmem:[#allocation12 + $0x18] sm:$0xff]
          %v521 = vld [vmem:[#allocation12 + $0x20] sm:$0xff]
          %v522 = vld [vmem:[#allocation12 + $0x28] sm:$0xff]
          %v523 = vld [vmem:[#allocation12 + $0x30] sm:$0xff]
          %v524 = vld [vmem:[#allocation12 + $0x38] sm:$0xff]
          %v525 = vld [vmem:[#allocation12 + $0x40] sm:$0xff]
          %v526 = vld [vmem:[#allocation12 + $0x48] sm:$0xff]
          %v527 = vld [vmem:[#allocation12 + $0x50] sm:$0xff]
          %v528 = vld [vmem:[#allocation12 + $0x58] sm:$0xff]
          %v529 = vld [vmem:[#allocation12 + $0x60] sm:$0xff]
          %v530 = vld [vmem:[#allocation12 + $0x68] sm:$0xff]
          %v531 = vld [vmem:[#allocation12 + $0x70] sm:$0xff]
          %v532 = vld [vmem:[#allocation12 + $0x78] sm:$0xff]
          %v533 = vld [vmem:[%s10] sm:$0x3]
          %v550 = vunpack.c.l.b16 %v517
          %v551 = vunpack.c.h.b16 %v517
          %v552 = vunpack.c.l.b16 %v518
          %v553 = vunpack.c.h.b16 %v518
          %v554 = vunpack.c.l.b16 %v519
          %v555 = vunpack.c.h.b16 %v519
          %v556 = vunpack.c.l.b16 %v520
          %v557 = vunpack.c.h.b16 %v520
          %v558 = vunpack.c.l.b16 %v521
          %v559 = vunpack.c.h.b16 %v521
          %v560 = vunpack.c.l.b16 %v522
          %v561 = vunpack.c.h.b16 %v522
          %v562 = vunpack.c.l.b16 %v523
          %v563 = vunpack.c.h.b16 %v523
          %v564 = vunpack.c.l.b16 %v524
          %v565 = vunpack.c.h.b16 %v524
          %v566 = vunpack.c.l.b16 %v525
          %v567 = vunpack.c.h.b16 %v525
          %v568 = vunpack.c.l.b16 %v526
          %v569 = vunpack.c.h.b16 %v526
          %v570 = vunpack.c.l.b16 %v527
          %v571 = vunpack.c.h.b16 %v527
          %v572 = vunpack.c.l.b16 %v528
          %v573 = vunpack.c.h.b16 %v528
          %v574 = vunpack.c.l.b16 %v529
          %v575 = vunpack.c.h.b16 %v529
          %v576 = vunpack.c.l.b16 %v530
          %v577 = vunpack.c.h.b16 %v530
          %v578 = vunpack.c.l.b16 %v531
          %v579 = vunpack.c.h.b16 %v531
          %v580 = vunpack.c.l.b16 %v532
          %v581 = vunpack.c.h.b16 %v532
          %v582 = vpack.c.b16 %v552, %v550
          %v583 = vpack.c.b16 %v553, %v551
          %v584 = vpack.c.b16 %v556, %v554
          %v585 = vpack.c.b16 %v557, %v555
          %v586 = vpack.c.b16 %v560, %v558
          %v587 = vpack.c.b16 %v561, %v559
          %v588 = vpack.c.b16 %v564, %v562
          %v589 = vpack.c.b16 %v565, %v563
          %v590 = vpack.c.b16 %v568, %v566
          %v591 = vpack.c.b16 %v569, %v567
          %v592 = vpack.c.b16 %v572, %v570
          %v593 = vpack.c.b16 %v573, %v571
          %v594 = vpack.c.b16 %v576, %v574
          %v595 = vpack.c.b16 %v577, %v575
          %v596 = vpack.c.b16 %v580, %v578
          %v597 = vpack.c.b16 %v581, %v579
          %v615 = vlaneseq
          %v616 = vshrl.u32 %v615, 7
          %v617 = vsub.s32 0, %v616
          %v618 = vrot.slane %v533, %v617
          %v619 = vlaneseq
          %v620 = vshrl.u32 %v619, 7
          %v621 = vsub.s32 1, %v620
          %v622 = vrot.slane %v533, %v621
          %625 = vmatprep.subr.bf16.mxu0 %v583
          %626 = vmatpush1.bf16.msra.mxu0 %v582
          %627 = vmatprep.subr.bf16.mxu0 %v585
          %628 = vmatpush1.bf16.msra.mxu0 %v584
          %629 = vmatprep.subr.bf16.mxu0 %v587
          %630 = vmatpush1.bf16.msra.mxu0 %v586
          %631 = vmatprep.subr.bf16.mxu0 %v589
          %632 = vmatpush1.bf16.msra.mxu0 %v588
          %633 = vmatprep.subr.bf16.mxu0 %v591
          %634 = vmatpush1.bf16.msra.mxu0 %v590
          %635 = vmatprep.subr.bf16.mxu0 %v593
          %636 = vmatpush1.bf16.msra.mxu0 %v592
          %637 = vmatprep.subr.bf16.mxu0 %v595
          %638 = vmatpush1.bf16.msra.mxu0 %v594
          %639 = vmatprep.subr.bf16.mxu0 %v597
          %640 = vmatpush1.bf16.msra.mxu0 %v596
          %641 = vmatprep.subr.bf16.mxu0 0
          %642 = vmatpush1.bf16.msra.mxu0 0
          %643 = vmatprep.subr.bf16.mxu0 0
          %644 = vmatpush1.bf16.msra.mxu0 0
          %645 = vmatprep.subr.bf16.mxu0 0
          %646 = vmatpush1.bf16.msra.mxu0 0
          %647 = vmatprep.subr.bf16.mxu0 0
          %648 = vmatpush1.bf16.msra.mxu0 0
          %649 = vmatprep.subr.bf16.mxu0 0
          %650 = vmatpush1.bf16.msra.mxu0 0
          %651 = vmatprep.subr.bf16.mxu0 0
          %652 = vmatpush1.bf16.msra.mxu0 0
          %653 = vmatprep.subr.bf16.mxu0 0
          %654 = vmatpush1.bf16.msra.mxu0 0
          %655 = vmatprep.subr.bf16.mxu0 0
          %656 = vmatpush1.bf16.msra.mxu0 0
          %657 = vmatprep.mubr.bf16.mxu0 0
          %658 = vmatmul.mubr.bf16.gmra.mrb[0].mxu0 %v516
          %v659 = vpop.f32.mrb[0].mxu0
          %v660 = vadd.f32 %v618, %v659
          %v661 = vpop.f32.mrb[0].mxu0
          %v662 = vadd.f32 %v622, %v661
          %v663 = vpop.f32.mrb[0].mxu0
          %v664 = vpop.f32.mrb[0].mxu0
          %665 = vdwg.mxu0
          %666 = vst [vmem:[#allocation2] sm:$0x1] %v660
          %667 = vst [vmem:[#allocation3] sm:$0x1] %v662
          %v668 = vld [vmem:[#allocation7] sm:$0xf]
          %v669 = vld [vmem:[#allocation7 + $0x4] sm:$0xf]
          %v670 = vld [vmem:[#allocation13] sm:$0xf]
          %v671 = vld [vmem:[#allocation13 + $0x4] sm:$0xf]
          %v672 = vld [vmem:[#allocation13 + $0x8] sm:$0xf]
          %v673 = vld [vmem:[#allocation13 + $0xc] sm:$0xf]
          %v674 = vld [vmem:[#allocation13 + $0x10] sm:$0xf]
          %v675 = vld [vmem:[#allocation13 + $0x14] sm:$0xf]
          %v676 = vld [vmem:[#allocation13 + $0x18] sm:$0xf]
          %v677 = vld [vmem:[#allocation13 + $0x1c] sm:$0xf]
          %v678 = vld [vmem:[#allocation13 + $0x20] sm:$0xf]
          %v679 = vld [vmem:[#allocation13 + $0x24] sm:$0xf]
          %v680 = vld [vmem:[#allocation13 + $0x28] sm:$0xf]
          %v681 = vld [vmem:[#allocation13 + $0x2c] sm:$0xf]
          %v682 = vld [vmem:[#allocation13 + $0x30] sm:$0xf]
          %v683 = vld [vmem:[#allocation13 + $0x34] sm:$0xf]
          %v684 = vld [vmem:[#allocation13 + $0x38] sm:$0xf]
          %v685 = vld [vmem:[#allocation13 + $0x3c] sm:$0xf]
          %v686 = vld [vmem:[%s10 + $0x2] sm:$0x1]
          %v688 = vlaneseq
          %v689 = vshrl.u32 %v688, 7
          %v690 = vsub.s32 0, %v689
          %v691 = vrot.slane %v686, %v690
          %v695 = vunpack.c.l.b16 %v668
          %v696 = vunpack.c.l.b16 %v669
          %v697 = vpack.c.b16 %v696, %v695
          %v715 = vunpack.c.l.b16 %v670
          %v716 = vunpack.c.l.b16 %v671
          %v717 = vunpack.c.l.b16 %v672
          %v718 = vunpack.c.l.b16 %v673
          %v719 = vunpack.c.l.b16 %v674
          %v720 = vunpack.c.l.b16 %v675
          %v721 = vunpack.c.l.b16 %v676
          %v722 = vunpack.c.l.b16 %v677
          %v723 = vunpack.c.l.b16 %v678
          %v724 = vunpack.c.l.b16 %v679
          %v725 = vunpack.c.l.b16 %v680
          %v726 = vunpack.c.l.b16 %v681
          %v727 = vunpack.c.l.b16 %v682
          %v728 = vunpack.c.l.b16 %v683
          %v729 = vunpack.c.l.b16 %v684
          %v730 = vunpack.c.l.b16 %v685
          %v731 = vpack.c.b16 %v716, %v715
          %v732 = vpack.c.b16 %v718, %v717
          %v733 = vpack.c.b16 %v720, %v719
          %v734 = vpack.c.b16 %v722, %v721
          %v735 = vpack.c.b16 %v724, %v723
          %v736 = vpack.c.b16 %v726, %v725
          %v737 = vpack.c.b16 %v728, %v727
          %v738 = vpack.c.b16 %v730, %v729
          %747 = vmatprep.subr.bf16.mxu0 0
          %748 = vmatpush1.bf16.msra.mxu0 %v731
          %749 = vmatprep.subr.bf16.mxu0 0
          %750 = vmatpush1.bf16.msra.mxu0 %v732
          %751 = vmatprep.subr.bf16.mxu0 0
          %752 = vmatpush1.bf16.msra.mxu0 %v733
          %753 = vmatprep.subr.bf16.mxu0 0
          %754 = vmatpush1.bf16.msra.mxu0 %v734
          %755 = vmatprep.subr.bf16.mxu0 0
          %756 = vmatpush1.bf16.msra.mxu0 %v735
          %757 = vmatprep.subr.bf16.mxu0 0
          %758 = vmatpush1.bf16.msra.mxu0 %v736
          %759 = vmatprep.subr.bf16.mxu0 0
          %760 = vmatpush1.bf16.msra.mxu0 %v737
          %761 = vmatprep.subr.bf16.mxu0 0
          %762 = vmatpush1.bf16.msra.mxu0 %v738
          %763 = vmatprep.subr.bf16.mxu0 0
          %764 = vmatpush1.bf16.msra.mxu0 0
          %765 = vmatprep.subr.bf16.mxu0 0
          %766 = vmatpush1.bf16.msra.mxu0 0
          %767 = vmatprep.subr.bf16.mxu0 0
          %768 = vmatpush1.bf16.msra.mxu0 0
          %769 = vmatprep.subr.bf16.mxu0 0
          %770 = vmatpush1.bf16.msra.mxu0 0
          %771 = vmatprep.subr.bf16.mxu0 0
          %772 = vmatpush1.bf16.msra.mxu0 0
          %773 = vmatprep.subr.bf16.mxu0 0
          %774 = vmatpush1.bf16.msra.mxu0 0
          %775 = vmatprep.subr.bf16.mxu0 0
          %776 = vmatpush1.bf16.msra.mxu0 0
          %777 = vmatprep.subr.bf16.mxu0 0
          %778 = vmatpush1.bf16.msra.mxu0 0
          %779 = vmatprep.mubr.bf16.mxu0 0
          %780 = vmatmul.mubr.bf16.gmra.mrb[0].mxu0 %v697
          %v781 = vpop.f32.mrb[0].mxu0
          %v782 = vadd.f32 %v691, %v781
          %v783 = vpop.f32.mrb[0].mxu0
          %v784 = vpop.f32.mrb[0].mxu0
          %v785 = vadd.f32 %v691, %v784
          %v786 = vpop.f32.mrb[0].mxu0
          %787 = vdwg.mxu0
          %788 = vst [vmem:[#allocation4] sm:$0xff] %v782
          %789 = vst [vmem:[#allocation4 + $0x8] sm:$0xff] %v785
        $region96: #{tpu_custom_call.1} parent=59 // pred_fallthru
          _
        %v790 = vld [vmem:[#allocation2] sm:$0x1]
        %v791 = vld [vmem:[#allocation3] sm:$0x1]
        %v792 = vpack.c.bf16 %v790, %v790
        %v793 = vld [vmem:[#allocation15] sm:$0xf]
        %v794 = vld [vmem:[#allocation15 + $0x4] sm:$0xf]
        %v795 = vld [vmem:[#allocation15 + $0x8] sm:$0xf]
        %v796 = vld [vmem:[#allocation15 + $0xc] sm:$0xf]
        %v797 = vld [vmem:[#allocation15 + $0x10] sm:$0xf]
        %v798 = vld [vmem:[#allocation15 + $0x14] sm:$0xf]
        %v799 = vld [vmem:[#allocation15 + $0x18] sm:$0xf]
        %v800 = vld [vmem:[#allocation15 + $0x1c] sm:$0xf]
        %v801 = vld [vmem:[#allocation15 + $0x20] sm:$0xf]
        %v802 = vld [vmem:[#allocation15 + $0x24] sm:$0xf]
        %v803 = vld [vmem:[#allocation15 + $0x28] sm:$0xf]
        %v804 = vld [vmem:[#allocation15 + $0x2c] sm:$0xf]
        %v805 = vld [vmem:[#allocation15 + $0x30] sm:$0xf]
        %v806 = vld [vmem:[#allocation15 + $0x34] sm:$0xf]
        %v807 = vld [vmem:[#allocation15 + $0x38] sm:$0xf]
        %v808 = vld [vmem:[#allocation15 + $0x3c] sm:$0xf]
        %v809 = vld [vmem:[%s10 + $0x3] sm:$0x1]
        %v826 = vunpack.c.l.b16 %v793
        %v827 = vunpack.c.l.b16 %v794
        %v828 = vunpack.c.l.b16 %v795
        %v829 = vunpack.c.l.b16 %v796
        %v830 = vunpack.c.l.b16 %v797
        %v831 = vunpack.c.l.b16 %v798
        %v832 = vunpack.c.l.b16 %v799
        %v833 = vunpack.c.l.b16 %v800
        %v834 = vunpack.c.l.b16 %v801
        %v835 = vunpack.c.l.b16 %v802
        %v836 = vunpack.c.l.b16 %v803
        %v837 = vunpack.c.l.b16 %v804
        %v838 = vunpack.c.l.b16 %v805
        %v839 = vunpack.c.l.b16 %v806
        %v840 = vunpack.c.l.b16 %v807
        %v841 = vunpack.c.l.b16 %v808
        %v842 = vpack.c.b16 %v827, %v826
        %v843 = vpack.c.b16 %v829, %v828
        %v844 = vpack.c.b16 %v831, %v830
        %v845 = vpack.c.b16 %v833, %v832
        %v846 = vpack.c.b16 %v835, %v834
        %v847 = vpack.c.b16 %v837, %v836
        %v848 = vpack.c.b16 %v839, %v838
        %v849 = vpack.c.b16 %v841, %v840
        %858 = vmatprep.subr.bf16.mxu0 0
        %859 = vmatpush1.bf16.msra.mxu0 %v842
        %860 = vmatprep.subr.bf16.mxu0 0
        %861 = vmatpush1.bf16.msra.mxu0 %v843
        %862 = vmatprep.subr.bf16.mxu0 0
        %863 = vmatpush1.bf16.msra.mxu0 %v844
        %864 = vmatprep.subr.bf16.mxu0 0
        %865 = vmatpush1.bf16.msra.mxu0 %v845
        %866 = vmatprep.subr.bf16.mxu0 0
        %867 = vmatpush1.bf16.msra.mxu0 %v846
        %868 = vmatprep.subr.bf16.mxu0 0
        %869 = vmatpush1.bf16.msra.mxu0 %v847
        %870 = vmatprep.subr.bf16.mxu0 0
        %871 = vmatpush1.bf16.msra.mxu0 %v848
        %872 = vmatprep.subr.bf16.mxu0 0
        %873 = vmatpush1.bf16.msra.mxu0 %v849
        %874 = vmatprep.subr.bf16.mxu0 0
        %875 = vmatpush1.bf16.msra.mxu0 0
        %876 = vmatprep.subr.bf16.mxu0 0
        %877 = vmatpush1.bf16.msra.mxu0 0
        %878 = vmatprep.subr.bf16.mxu0 0
        %879 = vmatpush1.bf16.msra.mxu0 0
        %880 = vmatprep.subr.bf16.mxu0 0
        %881 = vmatpush1.bf16.msra.mxu0 0
        %882 = vmatprep.subr.bf16.mxu0 0
        %883 = vmatpush1.bf16.msra.mxu0 0
        %884 = vmatprep.subr.bf16.mxu0 0
        %885 = vmatpush1.bf16.msra.mxu0 0
        %886 = vmatprep.subr.bf16.mxu0 0
        %887 = vmatpush1.bf16.msra.mxu0 0
        %888 = vmatprep.subr.bf16.mxu0 0
        %889 = vmatpush1.bf16.msra.mxu0 0
        %890 = vmatprep.mubr.bf16.mxu0 0
        %891 = vmatmul.mubr.bf16.gmra.mrb[0].mxu0 %v792
        %v892 = vpop.f32.mrb[0].mxu0
        %v893 = vadd.f32 %v809, %v892
        %v894 = vpop.f32.mrb[0].mxu0
        %v895 = vpop.f32.mrb[0].mxu0
        %v896 = vpop.f32.mrb[0].mxu0
        %897 = vdwg.mxu0
        %v898 = vld [vmem:[#allocation4] sm:$0xff]
        %v899 = vld [vmem:[#allocation4 + $0x8] sm:$0xff]
        %v900 = vlaneseq
        %v901 = vshrl.u32 %v900, 7
        %v902 = vsub.s32 0, %v901
        %v903 = vrot.slane %v893, %v902
        %v904 = vadd.f32 %v898, %v903
        %v905 = vadd.f32 %v899, %v903
        %v906 = vtanh.pop %v904
        %v907 = vtanh.pop %v905
        %v908 = vld [vmem:[%s6] sm:$0x1]
        %v909 = vunpack.c.l.bf16 %v908
        %910 = vmatprep.subr.mxu0 0.0
        %911 = vmatpush1.xpose.msra.mxu0 %v906
        %912 = vmatprep.subr.mxu0 0.0
        %913 = vmatpush1.xpose.msra.mxu0 %v907
        %914 = vmatprep.subr.mxu0 0.0
        %915 = vmatpush1.xpose.msra.mxu0 0.0
        %916 = vmatprep.subr.mxu0 0.0
        %917 = vmatpush1.xpose.msra.mxu0 0.0
        %918 = vmatprep.subr.mxu0 0.0
        %919 = vmatpush1.xpose.msra.mxu0 0.0
        %920 = vmatprep.subr.mxu0 0.0
        %921 = vmatpush1.xpose.msra.mxu0 0.0
        %922 = vmatprep.subr.mxu0 0.0
        %923 = vmatpush1.xpose.msra.mxu0 0.0
        %924 = vmatprep.subr.mxu0 0.0
        %925 = vmatpush1.xpose.msra.mxu0 0.0
        %926 = vmatprep.subr.mxu0 0.0
        %927 = vmatpush1.xpose.msra.mxu0 0.0
        %928 = vmatprep.subr.mxu0 0.0
        %929 = vmatpush1.xpose.msra.mxu0 0.0
        %930 = vmatprep.subr.mxu0 0.0
        %931 = vmatpush1.xpose.msra.mxu0 0.0
        %932 = vmatprep.subr.mxu0 0.0
        %933 = vmatpush1.xpose.msra.mxu0 0.0
        %934 = vmatprep.subr.mxu0 0.0
        %935 = vmatpush1.xpose.msra.mxu0 0.0
        %936 = vmatprep.subr.mxu0 0.0
        %937 = vmatpush1.xpose.msra.mxu0 0.0
        %938 = vmatprep.subr.mxu0 0.0
        %939 = vmatpush1.xpose.msra.mxu0 0.0
        %940 = vmatprep.subr.mxu0 0.0
        %941 = vmatpush1.xpose.msra.mxu0 0.0
        %942 = vmatprep.subr.mxu0 0.0
        %943 = vmatpush1.xpose.msra.mxu0 0.0
        %944 = vmatprep.subr.mxu0 0.0
        %945 = vmatpush1.xpose.msra.mxu0 0.0
        %946 = vmatprep.subr.mxu0 0.0
        %947 = vmatpush1.xpose.msra.mxu0 0.0
        %948 = vmatprep.subr.mxu0 0.0
        %949 = vmatpush1.xpose.msra.mxu0 0.0
        %950 = vmatprep.subr.mxu0 0.0
        %951 = vmatpush1.xpose.msra.mxu0 0.0
        %952 = vmatprep.subr.mxu0 0.0
        %953 = vmatpush1.xpose.msra.mxu0 0.0
        %954 = vmatprep.subr.mxu0 0.0
        %955 = vmatpush1.xpose.msra.mxu0 0.0
        %956 = vmatprep.subr.mxu0 0.0
        %957 = vmatpush1.xpose.msra.mxu0 0.0
        %958 = vmatprep.subr.mxu0 0.0
        %959 = vmatpush1.xpose.msra.mxu0 0.0
        %960 = vmatprep.subr.mxu0 0.0
        %961 = vmatpush1.xpose.msra.mxu0 0.0
        %962 = vmatprep.subr.mxu0 0.0
        %963 = vmatpush1.xpose.msra.mxu0 0.0
        %964 = vmatprep.subr.mxu0 0.0
        %965 = vmatpush1.xpose.msra.mxu0 0.0
        %966 = vmatprep.subr.mxu0 0.0
        %967 = vmatpush1.xpose.msra.mxu0 0.0
        %968 = vmatprep.subr.mxu0 0.0
        %969 = vmatpush1.xpose.msra.mxu0 0.0
        %970 = vmatprep.subr.mxu0 0.0
        %971 = vmatpush1.xpose.msra.mxu0 0.0
        %972 = vmatprep.subr.mxu0 0.0
        %973 = vmatpush1.xpose.msra.mxu0 0.0
        %974 = vmatprep.mubr.f32.mxu0 0.0
        %975 = vmatmul.mubr.f32.gmra.mrb[0].mxu0 %v909
        %v976 = vpop.f32.mrb[0].mxu0
        %v977 = vadd.f32 0.0, %v976
        %v978 = vpop.f32.mrb[0].mxu0
        %979 = vdwg.mxu0
        %v980 = vmul.f32 %v977, 1.442695
        %v981 = vpow.pop %v980
        %vm982 = vcmask 122880
        %v983 = vsel %vm982, %v981, 0.0
        %984 = vadd.xlane.f32.xlu0 %v983
        %v985 = vpop.xlane.xlu0 %984
        %v986 = vrcp.pop %v985
        %v987 = vmul.f32 %v981, %v986
        %v988 = vpack.c.bf16 %v987, %v987
        %v989 = vld [vmem:[#allocation7] sm:$0xf]
        %v990 = vld [vmem:[#allocation7 + $0x4] sm:$0xf]
        %v993 = vunpack.c.l.b16 %v989
        %v994 = vunpack.c.l.b16 %v990
        %v995 = vpack.c.b16 %v994, %v993
        %vm997 = vcmask 130048
        %v999 = vsel %vm997, %v988, 0
        %1001 = vmatprep.subr.bf16.mxu0 0
        %1002 = vmatpush1.bf16.msra.mxu0 %v995
        %1003 = vmatprep.subr.bf16.mxu0 0
        %1004 = vmatpush1.bf16.msra.mxu0 0
        %1005 = vmatprep.subr.bf16.mxu0 0
        %1006 = vmatpush1.bf16.msra.mxu0 0
        %1007 = vmatprep.subr.bf16.mxu0 0
        %1008 = vmatpush1.bf16.msra.mxu0 0
        %1009 = vmatprep.subr.bf16.mxu0 0
        %1010 = vmatpush1.bf16.msra.mxu0 0
        %1011 = vmatprep.subr.bf16.mxu0 0
        %1012 = vmatpush1.bf16.msra.mxu0 0
        %1013 = vmatprep.subr.bf16.mxu0 0
        %1014 = vmatpush1.bf16.msra.mxu0 0
        %1015 = vmatprep.subr.bf16.mxu0 0
        %1016 = vmatpush1.bf16.msra.mxu0 0
        %1017 = vmatprep.subr.bf16.mxu0 0
        %1018 = vmatpush1.bf16.msra.mxu0 0
        %1019 = vmatprep.subr.bf16.mxu0 0
        %1020 = vmatpush1.bf16.msra.mxu0 0
        %1021 = vmatprep.subr.bf16.mxu0 0
        %1022 = vmatpush1.bf16.msra.mxu0 0
        %1023 = vmatprep.subr.bf16.mxu0 0
        %1024 = vmatpush1.bf16.msra.mxu0 0
        %1025 = vmatprep.subr.bf16.mxu0 0
        %1026 = vmatpush1.bf16.msra.mxu0 0
        %1027 = vmatprep.subr.bf16.mxu0 0
        %1028 = vmatpush1.bf16.msra.mxu0 0
        %1029 = vmatprep.subr.bf16.mxu0 0
        %1030 = vmatpush1.bf16.msra.mxu0 0
        %1031 = vmatprep.subr.bf16.mxu0 0
        %1032 = vmatpush1.bf16.msra.mxu0 0
        %1033 = vmatprep.mubr.bf16.mxu0 0
        %1034 = vmatmul.mubr.bf16.gmra.mrb[0].mxu0 %v999
        %v1035 = vpop.f32.mrb[0].mxu0
        %v1036 = vadd.f32 0.0, %v1035
        %v1037 = vpop.f32.mrb[0].mxu0
        %v1038 = vpop.f32.mrb[0].mxu0
        %v1039 = vpop.f32.mrb[0].mxu0
        %1040 = vdwg.mxu0
        %s1041 = sld [smem:[#allocation6 + %s36]]
        %s1042 = scalar_lea.vmem [#allocation10], %s1041
        %v1043 = vld [vmem:[%s1042] sm:$0x1]
        %v1044 = vpack.c.bf16 %v1043, %v1043
        %v1045 = vpack.c.bf16 %v1036, %v1036
        %v1046 = vld [vmem:[#allocation16] sm:$0xff]
        %v1047 = vld [vmem:[#allocation16 + $0x8] sm:$0xff]
        %v1048 = vld [vmem:[#allocation16 + $0x10] sm:$0xff]
        %v1049 = vld [vmem:[#allocation16 + $0x18] sm:$0xff]
        %v1050 = vld [vmem:[#allocation16 + $0x20] sm:$0xff]
        %v1051 = vld [vmem:[#allocation16 + $0x28] sm:$0xff]
        %v1052 = vld [vmem:[#allocation16 + $0x30] sm:$0xff]
        %v1053 = vld [vmem:[#allocation16 + $0x38] sm:$0xff]
        %v1054 = vld [vmem:[#allocation16 + $0x40] sm:$0xff]
        %v1055 = vld [vmem:[#allocation16 + $0x48] sm:$0xff]
        %v1056 = vld [vmem:[#allocation16 + $0x50] sm:$0xff]
        %v1057 = vld [vmem:[#allocation16 + $0x58] sm:$0xff]
        %v1058 = vld [vmem:[#allocation16 + $0x60] sm:$0xff]
        %v1059 = vld [vmem:[#allocation16 + $0x68] sm:$0xff]
        %v1060 = vld [vmem:[#allocation16 + $0x70] sm:$0xff]
        %v1061 = vld [vmem:[#allocation16 + $0x78] sm:$0xff]
        %v1062 = vld [vmem:[#allocation16 + $0x80] sm:$0xff]
        %v1063 = vld [vmem:[#allocation16 + $0x88] sm:$0xff]
        %v1064 = vld [vmem:[#allocation16 + $0x90] sm:$0xff]
        %v1065 = vld [vmem:[#allocation16 + $0x98] sm:$0xff]
        %v1066 = vld [vmem:[#allocation16 + $0xa0] sm:$0xff]
        %v1067 = vld [vmem:[#allocation16 + $0xa8] sm:$0xff]
        %v1068 = vld [vmem:[#allocation16 + $0xb0] sm:$0xff]
        %v1069 = vld [vmem:[#allocation16 + $0xb8] sm:$0xff]
        %v1070 = vld [vmem:[#allocation16 + $0xc0] sm:$0xff]
        %v1071 = vld [vmem:[#allocation16 + $0xc8] sm:$0xff]
        %v1072 = vld [vmem:[#allocation16 + $0xd0] sm:$0xff]
        %v1073 = vld [vmem:[#allocation16 + $0xd8] sm:$0xff]
        %v1074 = vld [vmem:[#allocation16 + $0xe0] sm:$0xff]
        %v1075 = vld [vmem:[#allocation16 + $0xe8] sm:$0xff]
        %v1076 = vld [vmem:[#allocation16 + $0xf0] sm:$0xff]
        %v1077 = vld [vmem:[#allocation16 + $0xf8] sm:$0xff]
        %v1078 = vld [vmem:[#allocation16 + $0x100] sm:$0xff]
        %v1079 = vld [vmem:[#allocation16 + $0x108] sm:$0xff]
        %v1080 = vld [vmem:[#allocation16 + $0x110] sm:$0xff]
        %v1081 = vld [vmem:[#allocation16 + $0x118] sm:$0xff]
        %v1082 = vld [vmem:[#allocation16 + $0x120] sm:$0xff]
        %v1083 = vld [vmem:[#allocation16 + $0x128] sm:$0xff]
        %v1084 = vld [vmem:[#allocation16 + $0x130] sm:$0xff]
        %v1085 = vld [vmem:[#allocation16 + $0x138] sm:$0xff]
        %v1086 = vld [vmem:[#allocation16 + $0x140] sm:$0xff]
        %v1087 = vld [vmem:[#allocation16 + $0x148] sm:$0xff]
        %v1088 = vld [vmem:[#allocation16 + $0x150] sm:$0xff]
        %v1089 = vld [vmem:[#allocation16 + $0x158] sm:$0xff]
        %v1090 = vld [vmem:[#allocation16 + $0x160] sm:$0xff]
        %v1091 = vld [vmem:[#allocation16 + $0x168] sm:$0xff]
        %v1092 = vld [vmem:[#allocation16 + $0x170] sm:$0xff]
        %v1093 = vld [vmem:[#allocation16 + $0x178] sm:$0xff]
        %v1094 = vld [vmem:[#allocation16 + $0x180] sm:$0xff]
        %v1095 = vld [vmem:[#allocation16 + $0x188] sm:$0xff]
        %v1096 = vld [vmem:[#allocation16 + $0x190] sm:$0xff]
        %v1097 = vld [vmem:[#allocation16 + $0x198] sm:$0xff]
        %v1098 = vld [vmem:[#allocation16 + $0x1a0] sm:$0xff]
        %v1099 = vld [vmem:[#allocation16 + $0x1a8] sm:$0xff]
        %v1100 = vld [vmem:[#allocation16 + $0x1b0] sm:$0xff]
        %v1101 = vld [vmem:[#allocation16 + $0x1b8] sm:$0xff]
        %v1102 = vld [vmem:[#allocation16 + $0x1c0] sm:$0xff]
        %v1103 = vld [vmem:[#allocation16 + $0x1c8] sm:$0xff]
        %v1104 = vld [vmem:[#allocation16 + $0x1d0] sm:$0xff]
        %v1105 = vld [vmem:[#allocation16 + $0x1d8] sm:$0xff]
        %v1106 = vld [vmem:[#allocation16 + $0x1e0] sm:$0xff]
        %v1107 = vld [vmem:[#allocation16 + $0x1e8] sm:$0xff]
        %v1108 = vld [vmem:[#allocation16 + $0x1f0] sm:$0xff]
        %v1109 = vld [vmem:[#allocation16 + $0x1f8] sm:$0xff]
        %v1110 = vld [vmem:[#allocation16 + $0x200] sm:$0xff]
        %v1111 = vld [vmem:[#allocation16 + $0x208] sm:$0xff]
        %v1112 = vld [vmem:[#allocation16 + $0x210] sm:$0xff]
        %v1113 = vld [vmem:[#allocation16 + $0x218] sm:$0xff]
        %v1114 = vld [vmem:[#allocation16 + $0x220] sm:$0xff]
        %v1115 = vld [vmem:[#allocation16 + $0x228] sm:$0xff]
        %v1116 = vld [vmem:[#allocation16 + $0x230] sm:$0xff]
        %v1117 = vld [vmem:[#allocation16 + $0x238] sm:$0xff]
        %v1118 = vld [vmem:[#allocation16 + $0x240] sm:$0xff]
        %v1119 = vld [vmem:[#allocation16 + $0x248] sm:$0xff]
        %v1120 = vld [vmem:[#allocation16 + $0x250] sm:$0xff]
        %v1121 = vld [vmem:[#allocation16 + $0x258] sm:$0xff]
        %v1122 = vld [vmem:[#allocation16 + $0x260] sm:$0xff]
        %v1123 = vld [vmem:[#allocation16 + $0x268] sm:$0xff]
        %v1124 = vld [vmem:[#allocation16 + $0x270] sm:$0xff]
        %v1125 = vld [vmem:[#allocation16 + $0x278] sm:$0xff]
        %v1126 = vld [vmem:[#allocation16 + $0x280] sm:$0xff]
        %v1127 = vld [vmem:[#allocation16 + $0x288] sm:$0xff]
        %v1128 = vld [vmem:[#allocation16 + $0x290] sm:$0xff]
        %v1129 = vld [vmem:[#allocation16 + $0x298] sm:$0xff]
        %v1130 = vld [vmem:[#allocation16 + $0x2a0] sm:$0xff]
        %v1131 = vld [vmem:[#allocation16 + $0x2a8] sm:$0xff]
        %v1132 = vld [vmem:[#allocation16 + $0x2b0] sm:$0xff]
        %v1133 = vld [vmem:[#allocation16 + $0x2b8] sm:$0xff]
        %v1134 = vld [vmem:[#allocation16 + $0x2c0] sm:$0xff]
        %v1135 = vld [vmem:[#allocation16 + $0x2c8] sm:$0xff]
        %v1136 = vld [vmem:[#allocation16 + $0x2d0] sm:$0xff]
        %v1137 = vld [vmem:[#allocation16 + $0x2d8] sm:$0xff]
        %v1138 = vld [vmem:[#allocation16 + $0x2e0] sm:$0xff]
        %v1139 = vld [vmem:[#allocation16 + $0x2e8] sm:$0xff]
        %v1140 = vld [vmem:[#allocation16 + $0x2f0] sm:$0xff]
        %v1141 = vld [vmem:[#allocation16 + $0x2f8] sm:$0xff]
        %v1142 = vld [vmem:[%s10 + $0x4] sm:$0xf]
        %v1239 = vunpack.c.l.b16 %v1046
        %v1240 = vunpack.c.h.b16 %v1046
        %v1241 = vunpack.c.l.b16 %v1047
        %v1242 = vunpack.c.h.b16 %v1047
        %v1243 = vunpack.c.l.b16 %v1048
        %v1244 = vunpack.c.h.b16 %v1048
        %v1245 = vunpack.c.l.b16 %v1049
        %v1246 = vunpack.c.h.b16 %v1049
        %v1247 = vunpack.c.l.b16 %v1050
        %v1248 = vunpack.c.h.b16 %v1050
        %v1249 = vunpack.c.l.b16 %v1051
        %v1250 = vunpack.c.h.b16 %v1051
        %v1251 = vunpack.c.l.b16 %v1052
        %v1252 = vunpack.c.h.b16 %v1052
        %v1253 = vunpack.c.l.b16 %v1053
        %v1254 = vunpack.c.h.b16 %v1053
        %v1255 = vunpack.c.l.b16 %v1054
        %v1256 = vunpack.c.h.b16 %v1054
        %v1257 = vunpack.c.l.b16 %v1055
        %v1258 = vunpack.c.h.b16 %v1055
        %v1259 = vunpack.c.l.b16 %v1056
        %v1260 = vunpack.c.h.b16 %v1056
        %v1261 = vunpack.c.l.b16 %v1057
        %v1262 = vunpack.c.h.b16 %v1057
        %v1263 = vunpack.c.l.b16 %v1058
        %v1264 = vunpack.c.h.b16 %v1058
        %v1265 = vunpack.c.l.b16 %v1059
        %v1266 = vunpack.c.h.b16 %v1059
        %v1267 = vunpack.c.l.b16 %v1060
        %v1268 = vunpack.c.h.b16 %v1060
        %v1269 = vunpack.c.l.b16 %v1061
        %v1270 = vunpack.c.h.b16 %v1061
        %v1271 = vunpack.c.l.b16 %v1062
        %v1272 = vunpack.c.h.b16 %v1062
        %v1273 = vunpack.c.l.b16 %v1063
        %v1274 = vunpack.c.h.b16 %v1063
        %v1275 = vunpack.c.l.b16 %v1064
        %v1276 = vunpack.c.h.b16 %v1064
        %v1277 = vunpack.c.l.b16 %v1065
        %v1278 = vunpack.c.h.b16 %v1065
        %v1279 = vunpack.c.l.b16 %v1066
        %v1280 = vunpack.c.h.b16 %v1066
        %v1281 = vunpack.c.l.b16 %v1067
        %v1282 = vunpack.c.h.b16 %v1067
        %v1283 = vunpack.c.l.b16 %v1068
        %v1284 = vunpack.c.h.b16 %v1068
        %v1285 = vunpack.c.l.b16 %v1069
        %v1286 = vunpack.c.h.b16 %v1069
        %v1287 = vunpack.c.l.b16 %v1070
        %v1288 = vunpack.c.h.b16 %v1070
        %v1289 = vunpack.c.l.b16 %v1071
        %v1290 = vunpack.c.h.b16 %v1071
        %v1291 = vunpack.c.l.b16 %v1072
        %v1292 = vunpack.c.h.b16 %v1072
        %v1293 = vunpack.c.l.b16 %v1073
        %v1294 = vunpack.c.h.b16 %v1073
        %v1295 = vunpack.c.l.b16 %v1074
        %v1296 = vunpack.c.h.b16 %v1074
        %v1297 = vunpack.c.l.b16 %v1075
        %v1298 = vunpack.c.h.b16 %v1075
        %v1299 = vunpack.c.l.b16 %v1076
        %v1300 = vunpack.c.h.b16 %v1076
        %v1301 = vunpack.c.l.b16 %v1077
        %v1302 = vunpack.c.h.b16 %v1077
        %v1303 = vunpack.c.l.b16 %v1078
        %v1304 = vunpack.c.h.b16 %v1078
        %v1305 = vunpack.c.l.b16 %v1079
        %v1306 = vunpack.c.h.b16 %v1079
        %v1307 = vunpack.c.l.b16 %v1080
        %v1308 = vunpack.c.h.b16 %v1080
        %v1309 = vunpack.c.l.b16 %v1081
        %v1310 = vunpack.c.h.b16 %v1081
        %v1311 = vunpack.c.l.b16 %v1082
        %v1312 = vunpack.c.h.b16 %v1082
        %v1313 = vunpack.c.l.b16 %v1083
        %v1314 = vunpack.c.h.b16 %v1083
        %v1315 = vunpack.c.l.b16 %v1084
        %v1316 = vunpack.c.h.b16 %v1084
        %v1317 = vunpack.c.l.b16 %v1085
        %v1318 = vunpack.c.h.b16 %v1085
        %v1319 = vunpack.c.l.b16 %v1086
        %v1320 = vunpack.c.h.b16 %v1086
        %v1321 = vunpack.c.l.b16 %v1087
        %v1322 = vunpack.c.h.b16 %v1087
        %v1323 = vunpack.c.l.b16 %v1088
        %v1324 = vunpack.c.h.b16 %v1088
        %v1325 = vunpack.c.l.b16 %v1089
        %v1326 = vunpack.c.h.b16 %v1089
        %v1327 = vunpack.c.l.b16 %v1090
        %v1328 = vunpack.c.h.b16 %v1090
        %v1329 = vunpack.c.l.b16 %v1091
        %v1330 = vunpack.c.h.b16 %v1091
        %v1331 = vunpack.c.l.b16 %v1092
        %v1332 = vunpack.c.h.b16 %v1092
        %v1333 = vunpack.c.l.b16 %v1093
        %v1334 = vunpack.c.h.b16 %v1093
        %v1335 = vunpack.c.l.b16 %v1094
        %v1336 = vunpack.c.h.b16 %v1094
        %v1337 = vunpack.c.l.b16 %v1095
        %v1338 = vunpack.c.h.b16 %v1095
        %v1339 = vunpack.c.l.b16 %v1096
        %v1340 = vunpack.c.h.b16 %v1096
        %v1341 = vunpack.c.l.b16 %v1097
        %v1342 = vunpack.c.h.b16 %v1097
        %v1343 = vunpack.c.l.b16 %v1098
        %v1344 = vunpack.c.h.b16 %v1098
        %v1345 = vunpack.c.l.b16 %v1099
        %v1346 = vunpack.c.h.b16 %v1099
        %v1347 = vunpack.c.l.b16 %v1100
        %v1348 = vunpack.c.h.b16 %v1100
        %v1349 = vunpack.c.l.b16 %v1101
        %v1350 = vunpack.c.h.b16 %v1101
        %v1351 = vunpack.c.l.b16 %v1102
        %v1352 = vunpack.c.h.b16 %v1102
        %v1353 = vunpack.c.l.b16 %v1103
        %v1354 = vunpack.c.h.b16 %v1103
        %v1355 = vunpack.c.l.b16 %v1104
        %v1356 = vunpack.c.h.b16 %v1104
        %v1357 = vunpack.c.l.b16 %v1105
        %v1358 = vunpack.c.h.b16 %v1105
        %v1359 = vunpack.c.l.b16 %v1106
        %v1360 = vunpack.c.h.b16 %v1106
        %v1361 = vunpack.c.l.b16 %v1107
        %v1362 = vunpack.c.h.b16 %v1107
        %v1363 = vunpack.c.l.b16 %v1108
        %v1364 = vunpack.c.h.b16 %v1108
        %v1365 = vunpack.c.l.b16 %v1109
        %v1366 = vunpack.c.h.b16 %v1109
        %v1367 = vunpack.c.l.b16 %v1110
        %v1368 = vunpack.c.h.b16 %v1110
        %v1369 = vunpack.c.l.b16 %v1111
        %v1370 = vunpack.c.h.b16 %v1111
        %v1371 = vunpack.c.l.b16 %v1112
        %v1372 = vunpack.c.h.b16 %v1112
        %v1373 = vunpack.c.l.b16 %v1113
        %v1374 = vunpack.c.h.b16 %v1113
        %v1375 = vunpack.c.l.b16 %v1114
        %v1376 = vunpack.c.h.b16 %v1114
        %v1377 = vunpack.c.l.b16 %v1115
        %v1378 = vunpack.c.h.b16 %v1115
        %v1379 = vunpack.c.l.b16 %v1116
        %v1380 = vunpack.c.h.b16 %v1116
        %v1381 = vunpack.c.l.b16 %v1117
        %v1382 = vunpack.c.h.b16 %v1117
        %v1383 = vunpack.c.l.b16 %v1118
        %v1384 = vunpack.c.h.b16 %v1118
        %v1385 = vunpack.c.l.b16 %v1119
        %v1386 = vunpack.c.h.b16 %v1119
        %v1387 = vunpack.c.l.b16 %v1120
        %v1388 = vunpack.c.h.b16 %v1120
        %v1389 = vunpack.c.l.b16 %v1121
        %v1390 = vunpack.c.h.b16 %v1121
        %v1391 = vunpack.c.l.b16 %v1122
        %v1392 = vunpack.c.h.b16 %v1122
        %v1393 = vunpack.c.l.b16 %v1123
        %v1394 = vunpack.c.h.b16 %v1123
        %v1395 = vunpack.c.l.b16 %v1124
        %v1396 = vunpack.c.h.b16 %v1124
        %v1397 = vunpack.c.l.b16 %v1125
        %v1398 = vunpack.c.h.b16 %v1125
        %v1399 = vunpack.c.l.b16 %v1126
        %v1400 = vunpack.c.h.b16 %v1126
        %v1401 = vunpack.c.l.b16 %v1127
        %v1402 = vunpack.c.h.b16 %v1127
        %v1403 = vunpack.c.l.b16 %v1128
        %v1404 = vunpack.c.h.b16 %v1128
        %v1405 = vunpack.c.l.b16 %v1129
        %v1406 = vunpack.c.h.b16 %v1129
        %v1407 = vunpack.c.l.b16 %v1130
        %v1408 = vunpack.c.h.b16 %v1130
        %v1409 = vunpack.c.l.b16 %v1131
        %v1410 = vunpack.c.h.b16 %v1131
        %v1411 = vunpack.c.l.b16 %v1132
        %v1412 = vunpack.c.h.b16 %v1132
        %v1413 = vunpack.c.l.b16 %v1133
        %v1414 = vunpack.c.h.b16 %v1133
        %v1415 = vunpack.c.l.b16 %v1134
        %v1416 = vunpack.c.h.b16 %v1134
        %v1417 = vunpack.c.l.b16 %v1135
        %v1418 = vunpack.c.h.b16 %v1135
        %v1419 = vunpack.c.l.b16 %v1136
        %v1420 = vunpack.c.h.b16 %v1136
        %v1421 = vunpack.c.l.b16 %v1137
        %v1422 = vunpack.c.h.b16 %v1137
        %v1423 = vunpack.c.l.b16 %v1138
        %v1424 = vunpack.c.h.b16 %v1138
        %v1425 = vunpack.c.l.b16 %v1139
        %v1426 = vunpack.c.h.b16 %v1139
        %v1427 = vunpack.c.l.b16 %v1140
        %v1428 = vunpack.c.h.b16 %v1140
        %v1429 = vunpack.c.l.b16 %v1141
        %v1430 = vunpack.c.h.b16 %v1141
        %v1431 = vpack.c.b16 %v1243, %v1239
        %v1432 = vpack.c.b16 %v1244, %v1240
        %v1433 = vpack.c.b16 %v1245, %v1241
        %v1434 = vpack.c.b16 %v1246, %v1242
        %v1435 = vpack.c.b16 %v1251, %v1247
        %v1436 = vpack.c.b16 %v1252, %v1248
        %v1437 = vpack.c.b16 %v1253, %v1249
        %v1438 = vpack.c.b16 %v1254, %v1250
        %v1439 = vpack.c.b16 %v1259, %v1255
        %v1440 = vpack.c.b16 %v1260, %v1256
        %v1441 = vpack.c.b16 %v1261, %v1257
        %v1442 = vpack.c.b16 %v1262, %v1258
        %v1443 = vpack.c.b16 %v1267, %v1263
        %v1444 = vpack.c.b16 %v1268, %v1264
        %v1445 = vpack.c.b16 %v1269, %v1265
        %v1446 = vpack.c.b16 %v1270, %v1266
        %v1447 = vpack.c.b16 %v1275, %v1271
        %v1448 = vpack.c.b16 %v1276, %v1272
        %v1449 = vpack.c.b16 %v1277, %v1273
        %v1450 = vpack.c.b16 %v1278, %v1274
        %v1451 = vpack.c.b16 %v1283, %v1279
        %v1452 = vpack.c.b16 %v1284, %v1280
        %v1453 = vpack.c.b16 %v1285, %v1281
        %v1454 = vpack.c.b16 %v1286, %v1282
        %v1455 = vpack.c.b16 %v1291, %v1287
        %v1456 = vpack.c.b16 %v1292, %v1288
        %v1457 = vpack.c.b16 %v1293, %v1289
        %v1458 = vpack.c.b16 %v1294, %v1290
        %v1459 = vpack.c.b16 %v1299, %v1295
        %v1460 = vpack.c.b16 %v1300, %v1296
        %v1461 = vpack.c.b16 %v1301, %v1297
        %v1462 = vpack.c.b16 %v1302, %v1298
        %v1463 = vpack.c.b16 %v1307, %v1303
        %v1464 = vpack.c.b16 %v1308, %v1304
        %v1465 = vpack.c.b16 %v1309, %v1305
        %v1466 = vpack.c.b16 %v1310, %v1306
        %v1467 = vpack.c.b16 %v1315, %v1311
        %v1468 = vpack.c.b16 %v1316, %v1312
        %v1469 = vpack.c.b16 %v1317, %v1313
        %v1470 = vpack.c.b16 %v1318, %v1314
        %v1471 = vpack.c.b16 %v1323, %v1319
        %v1472 = vpack.c.b16 %v1324, %v1320
        %v1473 = vpack.c.b16 %v1325, %v1321
        %v1474 = vpack.c.b16 %v1326, %v1322
        %v1475 = vpack.c.b16 %v1331, %v1327
        %v1476 = vpack.c.b16 %v1332, %v1328
        %v1477 = vpack.c.b16 %v1333, %v1329
        %v1478 = vpack.c.b16 %v1334, %v1330
        %v1479 = vpack.c.b16 %v1339, %v1335
        %v1480 = vpack.c.b16 %v1340, %v1336
        %v1481 = vpack.c.b16 %v1341, %v1337
        %v1482 = vpack.c.b16 %v1342, %v1338
        %v1483 = vpack.c.b16 %v1347, %v1343
        %v1484 = vpack.c.b16 %v1348, %v1344
        %v1485 = vpack.c.b16 %v1349, %v1345
        %v1486 = vpack.c.b16 %v1350, %v1346
        %v1487 = vpack.c.b16 %v1355, %v1351
        %v1488 = vpack.c.b16 %v1356, %v1352
        %v1489 = vpack.c.b16 %v1357, %v1353
        %v1490 = vpack.c.b16 %v1358, %v1354
        %v1491 = vpack.c.b16 %v1363, %v1359
        %v1492 = vpack.c.b16 %v1364, %v1360
        %v1493 = vpack.c.b16 %v1365, %v1361
        %v1494 = vpack.c.b16 %v1366, %v1362
        %v1495 = vpack.c.b16 %v1371, %v1367
        %v1496 = vpack.c.b16 %v1372, %v1368
        %v1497 = vpack.c.b16 %v1373, %v1369
        %v1498 = vpack.c.b16 %v1374, %v1370
        %v1499 = vpack.c.b16 %v1379, %v1375
        %v1500 = vpack.c.b16 %v1380, %v1376
        %v1501 = vpack.c.b16 %v1381, %v1377
        %v1502 = vpack.c.b16 %v1382, %v1378
        %v1503 = vpack.c.b16 %v1387, %v1383
        %v1504 = vpack.c.b16 %v1388, %v1384
        %v1505 = vpack.c.b16 %v1389, %v1385
        %v1506 = vpack.c.b16 %v1390, %v1386
        %v1507 = vpack.c.b16 %v1395, %v1391
        %v1508 = vpack.c.b16 %v1396, %v1392
        %v1509 = vpack.c.b16 %v1397, %v1393
        %v1510 = vpack.c.b16 %v1398, %v1394
        %v1511 = vpack.c.b16 %v1403, %v1399
        %v1512 = vpack.c.b16 %v1404, %v1400
        %v1513 = vpack.c.b16 %v1405, %v1401
        %v1514 = vpack.c.b16 %v1406, %v1402
        %v1515 = vpack.c.b16 %v1411, %v1407
        %v1516 = vpack.c.b16 %v1412, %v1408
        %v1517 = vpack.c.b16 %v1413, %v1409
        %v1518 = vpack.c.b16 %v1414, %v1410
        %v1519 = vpack.c.b16 %v1419, %v1415
        %v1520 = vpack.c.b16 %v1420, %v1416
        %v1521 = vpack.c.b16 %v1421, %v1417
        %v1522 = vpack.c.b16 %v1422, %v1418
        %v1523 = vpack.c.b16 %v1427, %v1423
        %v1524 = vpack.c.b16 %v1428, %v1424
        %v1525 = vpack.c.b16 %v1429, %v1425
        %v1526 = vpack.c.b16 %v1430, %v1426
        %v1624 = vlaneseq
        %v1625 = vshrl.u32 %v1624, 7
        %v1626 = vsub.s32 0, %v1625
        %v1627 = vrot.slane %v1142, %v1626
        %v1628 = vlaneseq
        %v1629 = vshrl.u32 %v1628, 7
        %v1630 = vsub.s32 1, %v1629
        %v1631 = vrot.slane %v1142, %v1630
        %v1632 = vlaneseq
        %v1633 = vshrl.u32 %v1632, 7
        %v1634 = vsub.s32 2, %v1633
        %v1635 = vrot.slane %v1142, %v1634
        %v1636 = vlaneseq
        %v1637 = vshrl.u32 %v1636, 7
        %v1638 = vsub.s32 3, %v1637
        %v1639 = vrot.slane %v1142, %v1638
        %1644 = vmatprep.subr.bf16.mxu0 %v1432
        %1645 = vmatpush1.bf16.msra.mxu0 %v1431
        %1646 = vmatprep.subr.bf16.mxu0 %v1436
        %1647 = vmatpush1.bf16.msra.mxu0 %v1435
        %1648 = vmatprep.subr.bf16.mxu0 %v1440
        %1649 = vmatpush1.bf16.msra.mxu0 %v1439
        %1650 = vmatprep.subr.bf16.mxu0 %v1444
        %1651 = vmatpush1.bf16.msra.mxu0 %v1443
        %1652 = vmatprep.subr.bf16.mxu0 %v1448
        %1653 = vmatpush1.bf16.msra.mxu0 %v1447
        %1654 = vmatprep.subr.bf16.mxu0 %v1452
        %1655 = vmatpush1.bf16.msra.mxu0 %v1451
        %1656 = vmatprep.subr.bf16.mxu0 %v1456
        %1657 = vmatpush1.bf16.msra.mxu0 %v1455
        %1658 = vmatprep.subr.bf16.mxu0 %v1460
        %1659 = vmatpush1.bf16.msra.mxu0 %v1459
        %1660 = vmatprep.subr.bf16.mxu0 %v1464
        %1661 = vmatpush1.bf16.msra.mxu0 %v1463
        %1662 = vmatprep.subr.bf16.mxu0 %v1468
        %1663 = vmatpush1.bf16.msra.mxu0 %v1467
        %1664 = vmatprep.subr.bf16.mxu0 %v1472
        %1665 = vmatpush1.bf16.msra.mxu0 %v1471
        %1666 = vmatprep.subr.bf16.mxu0 %v1476
        %1667 = vmatpush1.bf16.msra.mxu0 %v1475
        %1668 = vmatprep.subr.bf16.mxu0 %v1480
        %1669 = vmatpush1.bf16.msra.mxu0 %v1479
        %1670 = vmatprep.subr.bf16.mxu0 %v1484
        %1671 = vmatpush1.bf16.msra.mxu0 %v1483
        %1672 = vmatprep.subr.bf16.mxu0 %v1488
        %1673 = vmatpush1.bf16.msra.mxu0 %v1487
        %1674 = vmatprep.subr.bf16.mxu0 %v1492
        %1675 = vmatpush1.bf16.msra.mxu0 %v1491
        %1676 = vmatprep.mubr.bf16.mxu0 %v1045
        %1677 = vmatmul.mubr.bf16.gmra.mrb[0].mxu0 %v1044
        %v1678 = vpop.f32.mrb[0].mxu0
        %v1679 = vadd.f32 %v1627, %v1678
        %v1680 = vpop.f32.mrb[0].mxu0
        %v1681 = vadd.f32 %v1631, %v1680
        %v1682 = vpop.f32.mrb[0].mxu0
        %v1683 = vpop.f32.mrb[0].mxu0
        %1684 = vdwg.mxu0
        %1685 = vmatprep.subr.bf16.mxu0 %v1496
        %1686 = vmatpush1.bf16.msra.mxu0 %v1495
        %1687 = vmatprep.subr.bf16.mxu0 %v1500
        %1688 = vmatpush1.bf16.msra.mxu0 %v1499
        %1689 = vmatprep.subr.bf16.mxu0 %v1504
        %1690 = vmatpush1.bf16.msra.mxu0 %v1503
        %1691 = vmatprep.subr.bf16.mxu0 %v1508
        %1692 = vmatpush1.bf16.msra.mxu0 %v1507
        %1693 = vmatprep.subr.bf16.mxu0 %v1512
        %1694 = vmatpush1.bf16.msra.mxu0 %v1511
        %1695 = vmatprep.subr.bf16.mxu0 %v1516
        %1696 = vmatpush1.bf16.msra.mxu0 %v1515
        %1697 = vmatprep.subr.bf16.mxu0 %v1520
        %1698 = vmatpush1.bf16.msra.mxu0 %v1519
        %1699 = vmatprep.subr.bf16.mxu0 %v1524
        %1700 = vmatpush1.bf16.msra.mxu0 %v1523
        %1701 = vmatprep.subr.bf16.mxu0 0
        %1702 = vmatpush1.bf16.msra.mxu0 0
        %1703 = vmatprep.subr.bf16.mxu0 0
        %1704 = vmatpush1.bf16.msra.mxu0 0
        %1705 = vmatprep.subr.bf16.mxu0 0
        %1706 = vmatpush1.bf16.msra.mxu0 0
        %1707 = vmatprep.subr.bf16.mxu0 0
        %1708 = vmatpush1.bf16.msra.mxu0 0
        %1709 = vmatprep.subr.bf16.mxu0 0
        %1710 = vmatpush1.bf16.msra.mxu0 0
        %1711 = vmatprep.subr.bf16.mxu0 0
        %1712 = vmatpush1.bf16.msra.mxu0 0
        %1713 = vmatprep.subr.bf16.mxu0 0
        %1714 = vmatpush1.bf16.msra.mxu0 0
        %1715 = vmatprep.subr.bf16.mxu0 0
        %1716 = vmatpush1.bf16.msra.mxu0 0
        %1717 = vmatprep.mubr.bf16.mxu0 0
        %1718 = vmatmul.mubr.bf16.gmra.mrb[0].mxu0 %v792
        %v1719 = vpop.f32.mrb[0].mxu0
        %v1720 = vadd.f32 %v1679, %v1719
        %v1721 = vpop.f32.mrb[0].mxu0
        %v1722 = vadd.f32 %v1681, %v1721
        %v1723 = vpop.f32.mrb[0].mxu0
        %v1724 = vpop.f32.mrb[0].mxu0
        %1725 = vdwg.mxu0
        %1726 = vmatprep.subr.bf16.mxu0 %v1434
        %1727 = vmatpush1.bf16.msra.mxu0 %v1433
        %1728 = vmatprep.subr.bf16.mxu0 %v1438
        %1729 = vmatpush1.bf16.msra.mxu0 %v1437
        %1730 = vmatprep.subr.bf16.mxu0 %v1442
        %1731 = vmatpush1.bf16.msra.mxu0 %v1441
        %1732 = vmatprep.subr.bf16.mxu0 %v1446
        %1733 = vmatpush1.bf16.msra.mxu0 %v1445
        %1734 = vmatprep.subr.bf16.mxu0 %v1450
        %1735 = vmatpush1.bf16.msra.mxu0 %v1449
        %1736 = vmatprep.subr.bf16.mxu0 %v1454
        %1737 = vmatpush1.bf16.msra.mxu0 %v1453
        %1738 = vmatprep.subr.bf16.mxu0 %v1458
        %1739 = vmatpush1.bf16.msra.mxu0 %v1457
        %1740 = vmatprep.subr.bf16.mxu0 %v1462
        %1741 = vmatpush1.bf16.msra.mxu0 %v1461
        %1742 = vmatprep.subr.bf16.mxu0 %v1466
        %1743 = vmatpush1.bf16.msra.mxu0 %v1465
        %1744 = vmatprep.subr.bf16.mxu0 %v1470
        %1745 = vmatpush1.bf16.msra.mxu0 %v1469
        %1746 = vmatprep.subr.bf16.mxu0 %v1474
        %1747 = vmatpush1.bf16.msra.mxu0 %v1473
        %1748 = vmatprep.subr.bf16.mxu0 %v1478
        %1749 = vmatpush1.bf16.msra.mxu0 %v1477
        %1750 = vmatprep.subr.bf16.mxu0 %v1482
        %1751 = vmatpush1.bf16.msra.mxu0 %v1481
        %1752 = vmatprep.subr.bf16.mxu0 %v1486
        %1753 = vmatpush1.bf16.msra.mxu0 %v1485
        %1754 = vmatprep.subr.bf16.mxu0 %v1490
        %1755 = vmatpush1.bf16.msra.mxu0 %v1489
        %1756 = vmatprep.subr.bf16.mxu0 %v1494
        %1757 = vmatpush1.bf16.msra.mxu0 %v1493
        %1758 = vmatprep.mubr.bf16.mxu0 %v1045
        %1759 = vmatmul.mubr.bf16.gmra.mrb[0].mxu0 %v1044
        %v1760 = vpop.f32.mrb[0].mxu0
        %v1761 = vadd.f32 %v1635, %v1760
        %v1762 = vpop.f32.mrb[0].mxu0
        %v1763 = vadd.f32 %v1639, %v1762
        %v1764 = vpop.f32.mrb[0].mxu0
        %v1765 = vpop.f32.mrb[0].mxu0
        %1766 = vdwg.mxu0
        %1767 = vmatprep.subr.bf16.mxu0 %v1498
        %1768 = vmatpush1.bf16.msra.mxu0 %v1497
        %1769 = vmatprep.subr.bf16.mxu0 %v1502
        %1770 = vmatpush1.bf16.msra.mxu0 %v1501
        %1771 = vmatprep.subr.bf16.mxu0 %v1506
        %1772 = vmatpush1.bf16.msra.mxu0 %v1505
        %1773 = vmatprep.subr.bf16.mxu0 %v1510
        %1774 = vmatpush1.bf16.msra.mxu0 %v1509
        %1775 = vmatprep.subr.bf16.mxu0 %v1514
        %1776 = vmatpush1.bf16.msra.mxu0 %v1513
        %1777 = vmatprep.subr.bf16.mxu0 %v1518
        %1778 = vmatpush1.bf16.msra.mxu0 %v1517
        %1779 = vmatprep.subr.bf16.mxu0 %v1522
        %1780 = vmatpush1.bf16.msra.mxu0 %v1521
        %1781 = vmatprep.subr.bf16.mxu0 %v1526
        %1782 = vmatpush1.bf16.msra.mxu0 %v1525
        %1783 = vmatprep.subr.bf16.mxu0 0
        %1784 = vmatpush1.bf16.msra.mxu0 0
        %1785 = vmatprep.subr.bf16.mxu0 0
        %1786 = vmatpush1.bf16.msra.mxu0 0
        %1787 = vmatprep.subr.bf16.mxu0 0
        %1788 = vmatpush1.bf16.msra.mxu0 0
        %1789 = vmatprep.subr.bf16.mxu0 0
        %1790 = vmatpush1.bf16.msra.mxu0 0
        %1791 = vmatprep.subr.bf16.mxu0 0
        %1792 = vmatpush1.bf16.msra.mxu0 0
        %1793 = vmatprep.subr.bf16.mxu0 0
        %1794 = vmatpush1.bf16.msra.mxu0 0
        %1795 = vmatprep.subr.bf16.mxu0 0
        %1796 = vmatpush1.bf16.msra.mxu0 0
        %1797 = vmatprep.subr.bf16.mxu0 0
        %1798 = vmatpush1.bf16.msra.mxu0 0
        %1799 = vmatprep.mubr.bf16.mxu0 0
        %1800 = vmatmul.mubr.bf16.gmra.mrb[0].mxu0 %v792
        %v1801 = vpop.f32.mrb[0].mxu0
        %v1802 = vadd.f32 %v1761, %v1801
        %v1803 = vpop.f32.mrb[0].mxu0
        %v1804 = vadd.f32 %v1763, %v1803
        %v1805 = vpop.f32.mrb[0].mxu0
        %v1806 = vpop.f32.mrb[0].mxu0
        %1807 = vdwg.mxu0
        %v1808 = vxor.u32 %v1720, 2147483648
        %v1809 = vmul.f32 %v1808, 1.442695
        %v1810 = vpow.pop %v1809
        %v1811 = vadd.f32 %v1810, 1.0
        %v1812 = vrcp.pop %v1811
        %v1813 = vmul.f32 1.0, %v1812
        %v1814 = vxor.u32 %v1722, 2147483648
        %v1815 = vmul.f32 %v1814, 1.442695
        %v1816 = vpow.pop %v1815
        %v1817 = vadd.f32 %v1816, 1.0
        %v1818 = vrcp.pop %v1817
        %v1819 = vmul.f32 1.0, %v1818
        %v1820 = vtanh.pop %v1802
        %v1821 = vxor.u32 %v1804, 2147483648
        %v1822 = vmul.f32 %v1821, 1.442695
        %v1823 = vpow.pop %v1822
        %v1824 = vadd.f32 %v1823, 1.0
        %v1825 = vrcp.pop %v1824
        %v1826 = vmul.f32 1.0, %v1825
        %v1827 = vmul.f32 %v1819, %v791
        %v1828 = vmul.f32 %v1813, %v1820
        %v1829 = vadd.f32 %v1827, %v1828
        %v1830 = vtanh.pop %v1829
        %v1831 = vmul.f32 %v1826, %v1830
        %1832 = vst [vmem:[#allocation2] sm:$0x1] %v1831
        %1833 = vst [vmem:[#allocation3] sm:$0x1] %v1829
        %v1834 = vpack.c.bf16 %v1831, %v1831
        %v1835 = vld [vmem:[#allocation18] sm:$0xf]
        %v1836 = vld [vmem:[#allocation18 + $0x4] sm:$0xf]
        %v1837 = vld [vmem:[#allocation18 + $0x8] sm:$0xf]
        %v1838 = vld [vmem:[#allocation18 + $0xc] sm:$0xf]
        %v1839 = vld [vmem:[#allocation18 + $0x10] sm:$0xf]
        %v1840 = vld [vmem:[#allocation18 + $0x14] sm:$0xf]
        %v1841 = vld [vmem:[#allocation18 + $0x18] sm:$0xf]
        %v1842 = vld [vmem:[#allocation18 + $0x1c] sm:$0xf]
        %v1843 = vld [vmem:[#allocation18 + $0x20] sm:$0xf]
        %v1844 = vld [vmem:[#allocation18 + $0x24] sm:$0xf]
        %v1845 = vld [vmem:[#allocation18 + $0x28] sm:$0xf]
        %v1846 = vld [vmem:[#allocation18 + $0x2c] sm:$0xf]
        %v1847 = vld [vmem:[#allocation18 + $0x30] sm:$0xf]
        %v1848 = vld [vmem:[#allocation18 + $0x34] sm:$0xf]
        %v1849 = vld [vmem:[#allocation18 + $0x38] sm:$0xf]
        %v1850 = vld [vmem:[#allocation18 + $0x3c] sm:$0xf]
        %v1851 = vld [vmem:[#allocation18 + $0x40] sm:$0xf]
        %v1852 = vld [vmem:[#allocation18 + $0x44] sm:$0xf]
        %v1853 = vld [vmem:[#allocation18 + $0x48] sm:$0xf]
        %v1854 = vld [vmem:[#allocation18 + $0x4c] sm:$0xf]
        %v1855 = vld [vmem:[#allocation18 + $0x50] sm:$0xf]
        %v1856 = vld [vmem:[#allocation18 + $0x54] sm:$0xf]
        %v1857 = vld [vmem:[#allocation18 + $0x58] sm:$0xf]
        %v1858 = vld [vmem:[#allocation18 + $0x5c] sm:$0xf]
        %v1859 = vld [vmem:[#allocation18 + $0x60] sm:$0xf]
        %v1860 = vld [vmem:[#allocation18 + $0x64] sm:$0xf]
        %v1861 = vld [vmem:[#allocation18 + $0x68] sm:$0xf]
        %v1862 = vld [vmem:[#allocation18 + $0x6c] sm:$0xf]
        %v1863 = vld [vmem:[#allocation18 + $0x70] sm:$0xf]
        %v1864 = vld [vmem:[#allocation18 + $0x74] sm:$0xf]
        %v1865 = vld [vmem:[#allocation18 + $0x78] sm:$0xf]
        %v1866 = vld [vmem:[#allocation18 + $0x7c] sm:$0xf]
        %v1899 = vunpack.c.l.b16 %v1835
        %v1900 = vunpack.c.l.b16 %v1836
        %v1901 = vunpack.c.l.b16 %v1837
        %v1902 = vunpack.c.l.b16 %v1838
        %v1903 = vunpack.c.l.b16 %v1839
        %v1904 = vunpack.c.l.b16 %v1840
        %v1905 = vunpack.c.l.b16 %v1841
        %v1906 = vunpack.c.l.b16 %v1842
        %v1907 = vunpack.c.l.b16 %v1843
        %v1908 = vunpack.c.l.b16 %v1844
        %v1909 = vunpack.c.l.b16 %v1845
        %v1910 = vunpack.c.l.b16 %v1846
        %v1911 = vunpack.c.l.b16 %v1847
        %v1912 = vunpack.c.l.b16 %v1848
        %v1913 = vunpack.c.l.b16 %v1849
        %v1914 = vunpack.c.l.b16 %v1850
        %v1915 = vunpack.c.l.b16 %v1851
        %v1916 = vunpack.c.l.b16 %v1852
        %v1917 = vunpack.c.l.b16 %v1853
        %v1918 = vunpack.c.l.b16 %v1854
        %v1919 = vunpack.c.l.b16 %v1855
        %v1920 = vunpack.c.l.b16 %v1856
        %v1921 = vunpack.c.l.b16 %v1857
        %v1922 = vunpack.c.l.b16 %v1858
        %v1923 = vunpack.c.l.b16 %v1859
        %v1924 = vunpack.c.l.b16 %v1860
        %v1925 = vunpack.c.l.b16 %v1861
        %v1926 = vunpack.c.l.b16 %v1862
        %v1927 = vunpack.c.l.b16 %v1863
        %v1928 = vunpack.c.l.b16 %v1864
        %v1929 = vunpack.c.l.b16 %v1865
        %v1930 = vunpack.c.l.b16 %v1866
        %v1931 = vpack.c.b16 %v1900, %v1899
        %v1932 = vpack.c.b16 %v1902, %v1901
        %v1933 = vpack.c.b16 %v1904, %v1903
        %v1934 = vpack.c.b16 %v1906, %v1905
        %v1935 = vpack.c.b16 %v1908, %v1907
        %v1936 = vpack.c.b16 %v1910, %v1909
        %v1937 = vpack.c.b16 %v1912, %v1911
        %v1938 = vpack.c.b16 %v1914, %v1913
        %v1939 = vpack.c.b16 %v1916, %v1915
        %v1940 = vpack.c.b16 %v1918, %v1917
        %v1941 = vpack.c.b16 %v1920, %v1919
        %v1942 = vpack.c.b16 %v1922, %v1921
        %v1943 = vpack.c.b16 %v1924, %v1923
        %v1944 = vpack.c.b16 %v1926, %v1925
        %v1945 = vpack.c.b16 %v1928, %v1927
        %v1946 = vpack.c.b16 %v1930, %v1929
        %1963 = vmatprep.subr.bf16.mxu0 0
        %1964 = vmatpush1.bf16.msra.mxu0 %v1931
        %1965 = vmatprep.subr.bf16.mxu0 0
        %1966 = vmatpush1.bf16.msra.mxu0 %v1932
        %1967 = vmatprep.subr.bf16.mxu0 0
        %1968 = vmatpush1.bf16.msra.mxu0 %v1933
        %1969 = vmatprep.subr.bf16.mxu0 0
        %1970 = vmatpush1.bf16.msra.mxu0 %v1934
        %1971 = vmatprep.subr.bf16.mxu0 0
        %1972 = vmatpush1.bf16.msra.mxu0 %v1935
        %1973 = vmatprep.subr.bf16.mxu0 0
        %1974 = vmatpush1.bf16.msra.mxu0 %v1936
        %1975 = vmatprep.subr.bf16.mxu0 0
        %1976 = vmatpush1.bf16.msra.mxu0 %v1937
        %1977 = vmatprep.subr.bf16.mxu0 0
        %1978 = vmatpush1.bf16.msra.mxu0 %v1938
        %1979 = vmatprep.subr.bf16.mxu0 0
        %1980 = vmatpush1.bf16.msra.mxu0 %v1939
        %1981 = vmatprep.subr.bf16.mxu0 0
        %1982 = vmatpush1.bf16.msra.mxu0 %v1940
        %1983 = vmatprep.subr.bf16.mxu0 0
        %1984 = vmatpush1.bf16.msra.mxu0 %v1941
        %1985 = vmatprep.subr.bf16.mxu0 0
        %1986 = vmatpush1.bf16.msra.mxu0 %v1942
        %1987 = vmatprep.subr.bf16.mxu0 0
        %1988 = vmatpush1.bf16.msra.mxu0 %v1943
        %1989 = vmatprep.subr.bf16.mxu0 0
        %1990 = vmatpush1.bf16.msra.mxu0 %v1944
        %1991 = vmatprep.subr.bf16.mxu0 0
        %1992 = vmatpush1.bf16.msra.mxu0 %v1945
        %1993 = vmatprep.subr.bf16.mxu0 0
        %1994 = vmatpush1.bf16.msra.mxu0 %v1946
        %1995 = vmatprep.mubr.bf16.mxu0 %v1045
        %1996 = vmatmul.mubr.bf16.gmra.mrb[0].mxu0 %v1834
        %v1997 = vpop.f32.mrb[0].mxu0
        %v1998 = vadd.f32 0.0, %v1997
        %v1999 = vpop.f32.mrb[0].mxu0
        %v2000 = vpop.f32.mrb[0].mxu0
        %v2001 = vpop.f32.mrb[0].mxu0
        %2002 = vdwg.mxu0
        %v2003 = vadd.f32 %v1043, %v1998
        %v2004 = vld [vmem:[%s10 + $0x8] sm:$0x1]
        %v2005 = vadd.f32 %v2003, %v2004
        %v2006 = vpack.c.bf16 %v2005, %v2005
        %v2007 = vld [vmem:[#allocation19] sm:$0xff]
        %v2008 = vld [vmem:[#allocation19 + $0x8] sm:$0xff]
        %v2009 = vld [vmem:[#allocation19 + $0x10] sm:$0xff]
        %v2010 = vld [vmem:[#allocation19 + $0x18] sm:$0xff]
        %v2011 = vld [vmem:[#allocation19 + $0x20] sm:$0xff]
        %v2012 = vld [vmem:[#allocation19 + $0x28] sm:$0xff]
        %v2013 = vld [vmem:[#allocation19 + $0x30] sm:$0xff]
        %v2014 = vld [vmem:[#allocation19 + $0x38] sm:$0xff]
        %v2015 = vld [vmem:[#allocation19 + $0x40] sm:$0xff]
        %v2016 = vld [vmem:[#allocation19 + $0x48] sm:$0xff]
        %v2017 = vld [vmem:[#allocation19 + $0x50] sm:$0xff]
        %v2018 = vld [vmem:[#allocation19 + $0x58] sm:$0xff]
        %v2019 = vld [vmem:[#allocation19 + $0x60] sm:$0xff]
        %v2020 = vld [vmem:[#allocation19 + $0x68] sm:$0xff]
        %v2021 = vld [vmem:[#allocation19 + $0x70] sm:$0xff]
        %v2022 = vld [vmem:[#allocation19 + $0x78] sm:$0xff]
        %v2023 = vld [vmem:[%s10 + $0x9] sm:$0x3]
        %v2040 = vunpack.c.l.b16 %v2007
        %v2041 = vunpack.c.h.b16 %v2007
        %v2042 = vunpack.c.l.b16 %v2008
        %v2043 = vunpack.c.h.b16 %v2008
        %v2044 = vunpack.c.l.b16 %v2009
        %v2045 = vunpack.c.h.b16 %v2009
        %v2046 = vunpack.c.l.b16 %v2010
        %v2047 = vunpack.c.h.b16 %v2010
        %v2048 = vunpack.c.l.b16 %v2011
        %v2049 = vunpack.c.h.b16 %v2011
        %v2050 = vunpack.c.l.b16 %v2012
        %v2051 = vunpack.c.h.b16 %v2012
        %v2052 = vunpack.c.l.b16 %v2013
        %v2053 = vunpack.c.h.b16 %v2013
        %v2054 = vunpack.c.l.b16 %v2014
        %v2055 = vunpack.c.h.b16 %v2014
        %v2056 = vunpack.c.l.b16 %v2015
        %v2057 = vunpack.c.h.b16 %v2015
        %v2058 = vunpack.c.l.b16 %v2016
        %v2059 = vunpack.c.h.b16 %v2016
        %v2060 = vunpack.c.l.b16 %v2017
        %v2061 = vunpack.c.h.b16 %v2017
        %v2062 = vunpack.c.l.b16 %v2018
        %v2063 = vunpack.c.h.b16 %v2018
        %v2064 = vunpack.c.l.b16 %v2019
        %v2065 = vunpack.c.h.b16 %v2019
        %v2066 = vunpack.c.l.b16 %v2020
        %v2067 = vunpack.c.h.b16 %v2020
        %v2068 = vunpack.c.l.b16 %v2021
        %v2069 = vunpack.c.h.b16 %v2021
        %v2070 = vunpack.c.l.b16 %v2022
        %v2071 = vunpack.c.h.b16 %v2022
        %v2072 = vpack.c.b16 %v2042, %v2040
        %v2073 = vpack.c.b16 %v2043, %v2041
        %v2074 = vpack.c.b16 %v2046, %v2044
        %v2075 = vpack.c.b16 %v2047, %v2045
        %v2076 = vpack.c.b16 %v2050, %v2048
        %v2077 = vpack.c.b16 %v2051, %v2049
        %v2078 = vpack.c.b16 %v2054, %v2052
        %v2079 = vpack.c.b16 %v2055, %v2053
        %v2080 = vpack.c.b16 %v2058, %v2056
        %v2081 = vpack.c.b16 %v2059, %v2057
        %v2082 = vpack.c.b16 %v2062, %v2060
        %v2083 = vpack.c.b16 %v2063, %v2061
        %v2084 = vpack.c.b16 %v2066, %v2064
        %v2085 = vpack.c.b16 %v2067, %v2065
        %v2086 = vpack.c.b16 %v2070, %v2068
        %v2087 = vpack.c.b16 %v2071, %v2069
        %v2105 = vlaneseq
        %v2106 = vshrl.u32 %v2105, 7
        %v2107 = vsub.s32 0, %v2106
        %v2108 = vrot.slane %v2023, %v2107
        %v2109 = vlaneseq
        %v2110 = vshrl.u32 %v2109, 7
        %v2111 = vsub.s32 1, %v2110
        %v2112 = vrot.slane %v2023, %v2111
        %2115 = vmatprep.subr.bf16.mxu0 %v2073
        %2116 = vmatpush1.bf16.msra.mxu0 %v2072
        %2117 = vmatprep.subr.bf16.mxu0 %v2075
        %2118 = vmatpush1.bf16.msra.mxu0 %v2074
        %2119 = vmatprep.subr.bf16.mxu0 %v2077
        %2120 = vmatpush1.bf16.msra.mxu0 %v2076
        %2121 = vmatprep.subr.bf16.mxu0 %v2079
        %2122 = vmatpush1.bf16.msra.mxu0 %v2078
        %2123 = vmatprep.subr.bf16.mxu0 %v2081
        %2124 = vmatpush1.bf16.msra.mxu0 %v2080
        %2125 = vmatprep.subr.bf16.mxu0 %v2083
        %2126 = vmatpush1.bf16.msra.mxu0 %v2082
        %2127 = vmatprep.subr.bf16.mxu0 %v2085
        %2128 = vmatpush1.bf16.msra.mxu0 %v2084
        %2129 = vmatprep.subr.bf16.mxu0 %v2087
        %2130 = vmatpush1.bf16.msra.mxu0 %v2086
        %2131 = vmatprep.subr.bf16.mxu0 0
        %2132 = vmatpush1.bf16.msra.mxu0 0
        %2133 = vmatprep.subr.bf16.mxu0 0
        %2134 = vmatpush1.bf16.msra.mxu0 0
        %2135 = vmatprep.subr.bf16.mxu0 0
        %2136 = vmatpush1.bf16.msra.mxu0 0
        %2137 = vmatprep.subr.bf16.mxu0 0
        %2138 = vmatpush1.bf16.msra.mxu0 0
        %2139 = vmatprep.subr.bf16.mxu0 0
        %2140 = vmatpush1.bf16.msra.mxu0 0
        %2141 = vmatprep.subr.bf16.mxu0 0
        %2142 = vmatpush1.bf16.msra.mxu0 0
        %2143 = vmatprep.subr.bf16.mxu0 0
        %2144 = vmatpush1.bf16.msra.mxu0 0
        %2145 = vmatprep.subr.bf16.mxu0 0
        %2146 = vmatpush1.bf16.msra.mxu0 0
        %2147 = vmatprep.mubr.bf16.mxu0 0
        %2148 = vmatmul.mubr.bf16.gmra.mrb[0].mxu0 %v2006
        %v2149 = vpop.f32.mrb[0].mxu0
        %v2150 = vadd.f32 %v2108, %v2149
        %v2151 = vpop.f32.mrb[0].mxu0
        %v2152 = vadd.f32 %v2112, %v2151
        %v2153 = vpop.f32.mrb[0].mxu0
        %v2154 = vpop.f32.mrb[0].mxu0
        %2155 = vdwg.mxu0
        %v2158 = vcombine.low %v2150, %v2152
        %v2160 = vunpack.c.l.s4 1966171168
        %v2161 = vunpack.c.0.s8 %v2160
        %v2162 = vlaneseq
        %v2163 = vshrl.u32 %v2162, 7
        %v2164 = vsub.s32 %v2161, %v2163
        %v2165 = vrot.slane %v2158, %v2164
        %v2167 = vunpack.c.l.s4 1966171168
        %v2168 = vunpack.c.0.s8 %v2167
        %v2169 = vlaneseq
        %v2170 = vshrl.u32 %v2169, 7
        %v2171 = vsub.s32 %v2168, %v2170
        %v2172 = vrot.slane %v2165, %v2171
        %v2174 = vlaneseq
        %vm2175 = vcmp.ge.s32.totalorder %v2174, 0
        %vm2176 = vcmp.lt.s32.totalorder %v2174, 256
        %vm2177 = vmand %vm2175, %vm2176
        %s2178 = sshra.s32 %s36, 3
        %s2179 = sand.u32 %s36, 7
        %s2180 = sshra.s32 %s36, 3
        %s2181 = sand.u32 %s36, 7
        %s2182 = smul.u32 %s2178, 2
        %s2183 = smul.u32 %s2182, 8
        %s2184 = sadd.s32 %s2183, %s2181
        %s2185 = scalar_lea.vmem [#allocation21], %s2184
        %2186 = vst.msk [vmem:[%s2185] ss:$8 sm:$0x3] %vm2177, %v2172
        %2187 = vst.msk [vmem:[%s2185] ss:$8 sm:$0x0] %vm2177, %v2172
        %2188 = vst [vmem:[#allocation22] sm:$0x1] %v1831
        %2189 = vst [vmem:[#allocation24] sm:$0x1] %v1829
        // Predicated region
        $region97: #{tpu_custom_call.1} parent=59 // pred_check
          %p2190 = pneg %p259
        $region98: #{tpu_custom_call.1} parent=59 // pred_check_branch
          %2192 = sbr.rel (%p2190) target = $region100
        $region99: #{tpu_custom_call.1} parent=59 // pred_region
          %s2194 = ssub.s32 256, 256
          %2195 = vsyncadd [#allocation9], %s2194
          %s2197 = sshll.u32 [#allocation21], 4
          %s2198 = int_to_ptr.vmem [resolvable:$true] %s2197
          %2200 = dma.vmem_to_hbm [thread:$0]  %s2198, 256, %s11, [#allocation9]
        $region100: #{tpu_custom_call.1} parent=59 // pred_fallthru
          _
        // Predicated region
        $region101: #{tpu_custom_call.1} parent=59 // pred_check
          %p2201 = pneg %p280
        $region102: #{tpu_custom_call.1} parent=59 // pred_check_branch
          %2203 = sbr.rel (%p2201) target = $region104
        $region103: #{tpu_custom_call.1} parent=59 // pred_region
          %s2205 = ssub.s32 16, 16
          %2206 = vsyncadd [#allocation23], %s2205
          %s2208 = sshll.u32 [#allocation22], 4
          %s2209 = int_to_ptr.vmem [resolvable:$true] %s2208
          %2211 = dma.vmem_to_hbm [thread:$0]  %s2209, 16, %s12, [#allocation23]
        $region104: #{tpu_custom_call.1} parent=59 // pred_fallthru
          _
        // Predicated region
        $region105: #{tpu_custom_call.1} parent=59 // pred_check
          %p2212 = pneg %p301
        $region106: #{tpu_custom_call.1} parent=59 // pred_check_branch
          %2214 = sbr.rel (%p2212) target = $region108
        $region107: #{tpu_custom_call.1} parent=59 // pred_region
          %s2216 = ssub.s32 16, 16
          %2217 = vsyncadd [#allocation23], %s2216
          %s2219 = sshll.u32 [#allocation24], 4
          %s2220 = int_to_ptr.vmem [resolvable:$true] %s2219
          %2222 = dma.vmem_to_hbm [thread:$0]  %s2220, 16, %s13, [#allocation23]
        $region108: #{tpu_custom_call.1} parent=59 // pred_fallthru
          _
        // Predicated region
        $region109: #{tpu_custom_call.1} parent=59 // pred_check
          %p2223 = pneg %p259
        $region110: #{tpu_custom_call.1} parent=59 // pred_check_branch
          %2225 = sbr.rel (%p2223) target = $region112
        $region111: #{tpu_custom_call.1} parent=59 // pred_region
          %2226 = dma.done [#allocation9], 256
        $region112: #{tpu_custom_call.1} parent=59 // pred_fallthru
          _
        // Predicated region
        $region113: #{tpu_custom_call.1} parent=59 // pred_check
          %p2227 = pneg %p280
        $region114: #{tpu_custom_call.1} parent=59 // pred_check_branch
          %2229 = sbr.rel (%p2227) target = $region116
        $region115: #{tpu_custom_call.1} parent=59 // pred_region
          %2230 = dma.done [#allocation23], 16
        $region116: #{tpu_custom_call.1} parent=59 // pred_fallthru
          _
        // Predicated region
        $region117: #{tpu_custom_call.1} parent=59 // pred_check
          %p2231 = pneg %p301
        $region118: #{tpu_custom_call.1} parent=59 // pred_check_branch
          %2233 = sbr.rel (%p2231) target = $region120
        $region119: #{tpu_custom_call.1} parent=59 // pred_region
          %2234 = dma.done [#allocation23], 16
        $region120: #{tpu_custom_call.1} parent=59 // pred_fallthru
          _
      $region60: #{tpu_custom_call.1} parent=5 // pred_fallthru
        _
      %p2235 = scmp.le.s32.totalorder 2, %s31
      // Predicated region
      $region121: #{tpu_custom_call.1} parent=5 // pred_check
        %p2236 = pneg %p2235
      $region122: #{tpu_custom_call.1} parent=5 // pred_check_branch
        %2238 = sbr.rel (%p2236) target = $region124
      $region123: #{tpu_custom_call.1} parent=5 // pred_region
        %s2239 = ssub.s32 %s31, 2
      $region124: #{tpu_custom_call.1} parent=5 // pred_fallthru
        _
    $region6: #{tpu_custom_call.1} parent=1 // loop_footer
      %s35 = sadd.s32 1, %s31
    $region7: #{tpu_custom_call.1} parent=1 // loop_footer_branch
      %30 = sbr.rel target = $region3
    $region8: #{tpu_custom_call.1} parent=1 // loop_exit
      _
    %2240 = vsyncpa [#allocation8], 1
    %s2241 = scalar_lea.sflag [#allocation8], 1
    %2242 = vsyncpa %s2241, 1
    %2243 = vsyncpa [#allocation11], 1
    %2244 = vsyncpa [#allocation14], 1
    %2245 = vsyncpa [#allocation17], 1
    %2246 = vsyncpa [#allocation20], 1
    %2247 = vsyncpa [#allocation9], 1
    %s2248 = scalar_lea.sflag [#allocation9], 1
    %2249 = vsyncpa %s2248, 1
    %2250 = vsyncpa [#allocation23], 1

</llo_original>
